<compile_context>
chip_gen: v7x
topology: tpu7x:2x2x1
jax: 0.10.0
libtpu: 0.0.40
codegen_flags: <defaults>
</compile_context>

<pallas_src>
import functools

import jax
import jax.numpy as jnp
import numpy as np
from jax.experimental import pallas as pl
from jax.experimental.pallas import tpu as pltpu


# ---------------------------------------------------------------------------
# Stage 1 kernels: fully parallel input projection + readout (no recurrence).
# ---------------------------------------------------------------------------
def proj_fused_kernel(x_ref, w_ref, b_ref, o_ref):
    o_ref[...] = (
        jnp.dot(x_ref[...], w_ref[...], preferred_element_type=jnp.float32)
        + b_ref[...]
    ).astype(o_ref.dtype)


def proj_split_kernel(x_ref, wg_ref, bg_ref, wq_ref, bq_ref, g_ref, q_ref):
    x = x_ref[...]
    g_ref[...] = (
        jnp.dot(x, wg_ref[...], preferred_element_type=jnp.float32) + bg_ref[...]
    ).astype(g_ref.dtype)
    q_ref[...] = (
        jnp.dot(x, wq_ref[...], preferred_element_type=jnp.float32) + bq_ref[...]
    ).astype(q_ref.dtype)


# ---------------------------------------------------------------------------
# Stage 2 kernel: time recurrence.  Grid = (batch tiles, time chunks); the
# hidden state is carried across time chunks in a VMEM scratch.
# ---------------------------------------------------------------------------
def gru_recurrence_kernel(xg_ref, h0_ref, whzr_ref, whh_ref, hout_ref, h_scratch,
                          *, t_chunk, hidden, unroll):
    H = hidden
    tc = pl.program_id(1)

    @pl.when(tc == 0)
    def _():
        h_scratch[...] = h0_ref[...]

    whzr = whzr_ref[...]          # (H, 2H) fused [W_hz | W_hr], resident across steps
    whh = whh_ref[...]            # (H, H)

    def step(t, h):
        xp = xg_ref[t]            # (TB, >=3H): precomputed x-projections for step t
        hzr = jnp.dot(h, whzr, preferred_element_type=jnp.float32)   # (TB, 2H)
        # Fused z/r gate add + one wide sigmoid; split lanes only at the combine
        # (avoids extra 32-lane slices on the serial critical path at small H).
        zr = jax.nn.sigmoid(xp[:, 0:2 * H] + hzr)
        z = zr[:, 0:H]
        r = zr[:, H:2 * H]
        # NB: torch `r * h @ W_hh` is `(r * h) @ W_hh` (same precedence, left-assoc).
        h_cand = jnp.tanh(
            xp[:, 2 * H:3 * H]
            + jnp.dot(r * h, whh, preferred_element_type=jnp.float32))
        return z * h + (1.0 - z) * h_cand

    # Bounded partial unroll: LLO scheduling visibility without instruction-memory
    # / vreg blow-up at large S (review opt #4).
    h = jax.lax.fori_loop(0, t_chunk, step, h_scratch[...], unroll=unroll)
    h_scratch[...] = h

    @pl.when(tc == pl.num_programs(1) - 1)
    def _():
        hout_ref[...] = h.astype(hout_ref.dtype)


# ---------------------------------------------------------------------------
# Tile-selection helpers.
# ---------------------------------------------------------------------------
def _largest_divisor_multiple_of(n, step, cap):
    """Largest d <= cap with d % step == 0 and n % d == 0 (n assumed % step == 0)."""
    best = step
    d = step
    limit = min(n, cap)
    while d <= limit:
        if n % d == 0:
            best = d
        d += step
    return best


def _pick_batch_tile(B):
    """Grow the stage-2 batch tile toward MXU row height instead of 8-row slivers.

    Keep >= 2 tiles (v7x megacore) only when each tile still has >= 128 rows;
    on v5e (single TC) a single fat tile is what we want anyway.
    """
    if B <= 256:
        if B >= 256 and B % 2 == 0:
            return B // 2
        return B
    return _largest_divisor_multiple_of(B, 8, 256)


def _pick_time_chunk(S, TB, GW, budget_bytes=4 << 20):
    """Time-chunk size so the double-buffered xg stream (2*TS*TB*GW*4 B) stays
    well under the 32 MiB scoped-VMEM default and v7x's 64 MiB physical VMEM."""
    per_step = TB * GW * 4
    ts = max(1, budget_bytes // (2 * per_step))
    ts = min(ts, S)
    while S % ts != 0:
        ts -= 1
    return ts


# ---------------------------------------------------------------------------
# Wrapper.
# ---------------------------------------------------------------------------
def my_gru_pallas(inputs, h0, params):
    """inputs: (S, B, V) f32 time-major; h0: (B, H) f32. Returns ((S*B, V), (B, H))."""
    S, B, V = inputs.shape
    H = h0.shape[1]
    assert V == H, "module's readout (X @ W_hq + b_q) requires vocab == hidden"
    assert B % 8 == 0, "keep batch a multiple of 8 (sublane tiling)"
    (W_xz, W_hz, b_z, W_xr, W_hr, b_r, W_xh, W_hh, b_h, W_hq, b_q) = params

    SB = S * B
    x_flat = inputs.reshape(SB, V)
    # 512-row tiles are ~85% of HBM roofline for this mem-bound matmul; never fall
    # back to a single (SB, GW) block (review opt #6).
    TM = _largest_divisor_multiple_of(SB, 8, 512)

    # ---- Stage 1: hoisted x-projection + readout -----------------------------
    split = (3 * H) % 128 == 0 and V % 128 == 0
    if split:
        # Scaled sizes: gates and readout are independently lane-dense, so split
        # them and feed only the gates slab to stage 2 (saves 25% of its DMA).
        W_g = jnp.concatenate([W_xz, W_xr, W_xh], axis=1)                 # (V, 3H)
        b_g = jnp.concatenate([b_z, b_r, b_h], axis=0).reshape(1, 3 * H)
        b_qr = b_q.reshape(1, V)
        GW = 3 * H
        gates, out_seq = pl.pallas_call(
            proj_split_kernel,
            out_shape=(jax.ShapeDtypeStruct((SB, GW), jnp.float32),
                       jax.ShapeDtypeStruct((SB, V), jnp.float32)),
            grid_spec=pltpu.PrefetchScalarGridSpec(
                num_scalar_prefetch=0,
                grid=(SB // TM,),
                in_specs=[
                    pl.BlockSpec((TM, V), lambda i: (i, 0)),
                    pl.BlockSpec((V, GW), lambda i: (0, 0),
                                 pipeline_mode=pl.Buffered(1)),
                    pl.BlockSpec((1, GW), lambda i: (0, 0),
                                 pipeline_mode=pl.Buffered(1)),
                    pl.BlockSpec((H, V), lambda i: (0, 0),
                                 pipeline_mode=pl.Buffered(1)),
                    pl.BlockSpec((1, V), lambda i: (0, 0),
                                 pipeline_mode=pl.Buffered(1)),
                ],
                out_specs=[pl.BlockSpec((TM, GW), lambda i: (i, 0)),
                           pl.BlockSpec((TM, V), lambda i: (i, 0))],
            ),
            compiler_params=pltpu.CompilerParams(
                dimension_semantics=("parallel",)),
        )(x_flat, W_g, b_g, W_hq, b_qr)
        xg = gates.reshape(S, B, GW)
    else:
        # Toy sizes (H=V=32): fused (V, 3H+V)=128-wide weight keeps the single
        # output exactly lane-dense; stage 2 simply ignores the readout columns.
        W_xcat = jnp.concatenate([W_xz, W_xr, W_xh, W_hq], axis=1)        # (V, 3H+V)
        b_cat = jnp.concatenate([b_z, b_r, b_h, b_q], axis=0).reshape(1, 3 * H + V)
        GW = 3 * H + V
        xproj = pl.pallas_call(
            proj_fused_kernel,
            out_shape=jax.ShapeDtypeStruct((SB, GW), jnp.float32),
            grid_spec=pltpu.PrefetchScalarGridSpec(
                num_scalar_prefetch=0,
                grid=(SB // TM,),
                in_specs=[
                    pl.BlockSpec((TM, V), lambda i: (i, 0)),
                    pl.BlockSpec((V, GW), lambda i: (0, 0),
                                 pipeline_mode=pl.Buffered(1)),
                    pl.BlockSpec((1, GW), lambda i: (0, 0),
                                 pipeline_mode=pl.Buffered(1)),
                ],
                out_specs=pl.BlockSpec((TM, GW), lambda i: (i, 0)),
            ),
            compiler_params=pltpu.CompilerParams(
                dimension_semantics=("parallel",)),
        )(x_flat, W_xcat, b_cat)
        # Readout columns are the per-step outputs; torch.cat(outputs, dim=0) is
        # exactly the time-major row order of x_flat, which we already have.
        out_seq = xproj[:, 3 * H:]              # (S*B, V) == cat_t (X_t @ W_hq + b_q)
        xg = xproj.reshape(S, B, GW)

    # ---- Stage 2: recurrence -------------------------------------------------
    W_hzr = jnp.concatenate([W_hz, W_hr], axis=1)                         # (H, 2H)
    TB = _pick_batch_tile(B)
    TS = _pick_time_chunk(S, TB, GW)
    unroll = min(TS, 8)

    # TODO(synk): at large S/TB, consider feeding stage 2 a batch-major (B, S, GW)
    #             copy of xg so each time chunk is one contiguous HBM run — only
    #             worth it if the xg stream becomes the stage-2 bottleneck.
    h_final = pl.pallas_call(
        functools.partial(gru_recurrence_kernel,
                          t_chunk=TS, hidden=H, unroll=unroll),
        out_shape=jax.ShapeDtypeStruct((B, H), jnp.float32),
        grid_spec=pltpu.PrefetchScalarGridSpec(
            num_scalar_prefetch=0,
            grid=(B // TB, S // TS),
            in_specs=[
                # Time-chunked xg stream: DMA of chunk tc+1 overlaps chunk tc's
                # recurrence; VMEM use is 2*TS*TB*GW*4 bytes, not (S, TB, GW).
                pl.BlockSpec((TS, TB, GW), lambda b, tc: (tc, b, 0)),
                pl.BlockSpec((TB, H), lambda b, tc: (b, 0)),
                pl.BlockSpec((H, 2 * H), lambda b, tc: (0, 0),
                             pipeline_mode=pl.Buffered(1)),
                pl.BlockSpec((H, H), lambda b, tc: (0, 0),
                             pipeline_mode=pl.Buffered(1)),
            ],
            out_specs=pl.BlockSpec((TB, H), lambda b, tc: (b, 0)),
            scratch_shapes=[pltpu.VMEM((TB, H), jnp.float32)],   # h carry
        ),
        compiler_params=pltpu.CompilerParams(
            dimension_semantics=("parallel", "arbitrary")),      # batch || , time seq
    )(xg, h0, W_hzr, W_hh)

    return out_seq, h_final


# ---------------------------------------------------------------------------
# Pure-JAX reference mirroring the PyTorch loop exactly.
# ---------------------------------------------------------------------------
def my_gru_ref(inputs, h0, params):
    (W_xz, W_hz, b_z, W_xr, W_hr, b_r, W_xh, W_hh, b_h, W_hq, b_q) = params
    h = h0
    outs = []
    for X in inputs:
        z = jax.nn.sigmoid(X @ W_xz + h @ W_hz + b_z)
        r = jax.nn.sigmoid(X @ W_xr + h @ W_hr + b_r)
        h_cand = jnp.tanh(X @ W_xh + (r * h) @ W_hh + b_h)
        h = z * h + (1 - z) * h_cand
        outs.append(X @ W_hq + b_q)
    return jnp.concatenate(outs, axis=0), h


def make_params(key, vocab_size, num_hidden):
    ks = jax.random.split(key, 7)
    f32 = jnp.float32
    W_xz = jax.random.normal(ks[0], (vocab_size, num_hidden), f32) * 0.01
    W_hz = jax.random.normal(ks[1], (num_hidden, num_hidden), f32) * 0.01
    b_z = jnp.zeros((num_hidden,), f32)
    W_xr = jax.random.normal(ks[2], (vocab_size, num_hidden), f32) * 0.01
    W_hr = jax.random.normal(ks[3], (num_hidden, num_hidden), f32) * 0.01
    b_r = jnp.zeros((num_hidden,), f32)
    W_xh = jax.random.normal(ks[4], (vocab_size, num_hidden), f32) * 0.01
    W_hh = jax.random.normal(ks[5], (num_hidden, num_hidden), f32) * 0.01
    b_h = jnp.zeros((num_hidden,), f32)
    W_hq = jax.random.normal(ks[6], (num_hidden, vocab_size), f32) * 0.01
    b_q = jnp.zeros((num_hidden,), f32)
    return (W_xz, W_hz, b_z, W_xr, W_hr, b_r, W_xh, W_hh, b_h, W_hq, b_q)


if __name__ == "__main__":
    SEQ, BATCH = 8, 8
    VOCAB = NUM_HIDDEN = 32   # module's readout requires vocab == hidden (see note)

    key = jax.random.PRNGKey(0)
    k_in, k_h, k_p = jax.random.split(key, 3)
    inputs = jax.random.normal(k_in, (SEQ, BATCH, VOCAB), jnp.float32)
    h0 = jax.random.normal(k_h, (BATCH, NUM_HIDDEN), jnp.float32)
    params = make_params(k_p, VOCAB, NUM_HIDDEN)

    out, h_final = jax.jit(functools.partial(my_gru_pallas, params=params))(inputs, h0)
    jax.block_until_ready((out, h_final))

    out_ref, h_ref = my_gru_ref(inputs, h0, params)
    np.testing.assert_allclose(np.asarray(out), np.asarray(out_ref), rtol=1e-5, atol=1e-5)
    np.testing.assert_allclose(np.asarray(h_final), np.asarray(h_ref), rtol=1e-5, atol=1e-5)

    print("KERNEL_OK")
</pallas_src>

<mosaic_0001>
module attributes {stable_mosaic.version = 11 : i64} {
  func.func @proj_fused_kernel(%arg0: i32, %arg1: memref<64x32xf32, #tpu.memory_space<vmem>>, %arg2: memref<32x128xf32, #tpu.memory_space<vmem>>, %arg3: memref<1x128xf32, #tpu.memory_space<vmem>>, %arg4: memref<64x128xf32, #tpu.memory_space<vmem>>) attributes {dimension_semantics = [#tpu.dimension_semantics<parallel>], iteration_bounds = array<i64: 1>, scalar_prefetch = 0 : i64, scratch_operands = 0 : i64, tpu.core_type = #tpu.core_type<tc>, window_params = [{transform_indices = @transform_0, window_bounds = array<i64: 64, 32>}, {pipeline_mode = #tpu.pipeline_mode<synchronous>, transform_indices = @transform_1, window_bounds = array<i64: 32, 128>}, {pipeline_mode = #tpu.pipeline_mode<synchronous>, transform_indices = @transform_2, window_bounds = array<i64: 1, 128>}, {transform_indices = @transform_3, window_bounds = array<i64: 64, 128>}]} {
    %c0 = arith.constant 0 : index
    %c0_0 = arith.constant 0 : index
    %0 = vector.load %arg1[%c0, %c0_0] : memref<64x32xf32, #tpu.memory_space<vmem>>, vector<64x32xf32>
    %c0_1 = arith.constant 0 : index
    %c0_2 = arith.constant 0 : index
    %1 = vector.load %arg2[%c0_1, %c0_2] : memref<32x128xf32, #tpu.memory_space<vmem>>, vector<32x128xf32>
    %cst = arith.constant dense<0.000000e+00> : vector<64x128xf32>
    %2 = tpu.matmul %0, %1, %cst {dimension_numbers = #tpu.dot_dimension_numbers<[1], [0], [0], [1], [0, 0, 1, 1], [], []>} : vector<64x32xf32>, vector<32x128xf32>, vector<64x128xf32> -> vector<64x128xf32>
    %c0_3 = arith.constant 0 : index
    %c0_4 = arith.constant 0 : index
    %3 = vector.load %arg3[%c0_3, %c0_4] : memref<1x128xf32, #tpu.memory_space<vmem>>, vector<1x128xf32>
    %4 = vector.broadcast %3 : vector<1x128xf32> to vector<64x128xf32>
    %5 = arith.addf %2, %4 : vector<64x128xf32>
    %c0_5 = arith.constant 0 : index
    %c0_6 = arith.constant 0 : index
    %6 = vector.load %arg4[%c0_5, %c0_6] : memref<64x128xf32, #tpu.memory_space<vmem>>, vector<64x128xf32>
    tpu.vector_store %arg4[%c0_5, %c0_6], %5 {strides = array<i32>} : memref<64x128xf32, #tpu.memory_space<vmem>>, vector<64x128xf32>,
    return
  }
  func.func @transform_0(%arg0: i32) -> (i32, i32) {
    %c0_i32 = arith.constant 0 : i32
    %c0_i32_0 = arith.constant 0 : i32
    return %arg0, %c0_i32 : i32, i32
  }
  func.func @transform_1(%arg0: i32) -> (i32, i32) {
    %c0_i32 = arith.constant 0 : i32
    %c0_i32_0 = arith.constant 0 : i32
    %c0_i32_1 = arith.constant 0 : i32
    return %c0_i32, %c0_i32_0 : i32, i32
  }
  func.func @transform_2(%arg0: i32) -> (i32, i32) {
    %c0_i32 = arith.constant 0 : i32
    %c0_i32_0 = arith.constant 0 : i32
    %c0_i32_1 = arith.constant 0 : i32
    return %c0_i32, %c0_i32_0 : i32, i32
  }
  func.func @transform_3(%arg0: i32) -> (i32, i32) {
    %c0_i32 = arith.constant 0 : i32
    %c0_i32_0 = arith.constant 0 : i32
    return %arg0, %c0_i32 : i32, i32
  }
}

module attributes {stable_mosaic.version = 11 : i64} {
  func.func @gru_recurrence_kernel(%arg0: i32, %arg1: i32, %arg2: memref<8x8x128xf32, #tpu.memory_space<vmem>>, %arg3: memref<8x32xf32, #tpu.memory_space<vmem>>, %arg4: memref<32x64xf32, #tpu.memory_space<vmem>>, %arg5: memref<32x32xf32, #tpu.memory_space<vmem>>, %arg6: memref<8x32xf32, #tpu.memory_space<vmem>>, %arg7: memref<8x32xf32, #tpu.memory_space<vmem>>) attributes {dimension_semantics = [#tpu.dimension_semantics<parallel>, #tpu.dimension_semantics<arbitrary>], iteration_bounds = array<i64: 1, 1>, scalar_prefetch = 0 : i64, scratch_operands = 1 : i64, tpu.core_type = #tpu.core_type<tc>, window_params = [{transform_indices = @transform_0, window_bounds = array<i64: 8, 8, 128>}, {transform_indices = @transform_1, window_bounds = array<i64: 8, 32>}, {pipeline_mode = #tpu.pipeline_mode<synchronous>, transform_indices = @transform_2, window_bounds = array<i64: 32, 64>}, {pipeline_mode = #tpu.pipeline_mode<synchronous>, transform_indices = @transform_3, window_bounds = array<i64: 32, 32>}, {transform_indices = @transform_4, window_bounds = array<i64: 8, 32>}]} {
    %c0_i32 = arith.constant 0 : i32
    %0 = arith.cmpi eq, %arg1, %c0_i32 : i32
    %1 = arith.extui %0 : i1 to i32
    %c0_i32_0 = arith.constant 0 : i32
    %2 = arith.cmpi ne, %1, %c0_i32_0 : i32
    scf.if %2 {
      %c0_58 = arith.constant 0 : index
      %c0_59 = arith.constant 0 : index
      %194 = vector.load %arg3[%c0_58, %c0_59] : memref<8x32xf32, #tpu.memory_space<vmem>>, vector<8x32xf32>
      %c0_60 = arith.constant 0 : index
      %c0_61 = arith.constant 0 : index
      %195 = vector.load %arg7[%c0_60, %c0_61] : memref<8x32xf32, #tpu.memory_space<vmem>>, vector<8x32xf32>
      tpu.vector_store %arg7[%c0_60, %c0_61], %194 {strides = array<i32>} : memref<8x32xf32, #tpu.memory_space<vmem>>, vector<8x32xf32>,
    } else {
    }
    %c0 = arith.constant 0 : index
    %c0_1 = arith.constant 0 : index
    %3 = vector.load %arg4[%c0, %c0_1] : memref<32x64xf32, #tpu.memory_space<vmem>>, vector<32x64xf32>
    %c0_2 = arith.constant 0 : index
    %c0_3 = arith.constant 0 : index
    %4 = vector.load %arg5[%c0_2, %c0_3] : memref<32x32xf32, #tpu.memory_space<vmem>>, vector<32x32xf32>
    %c0_4 = arith.constant 0 : index
    %c0_5 = arith.constant 0 : index
    %5 = vector.load %arg7[%c0_4, %c0_5] : memref<8x32xf32, #tpu.memory_space<vmem>>, vector<8x32xf32>
    %c0_i32_6 = arith.constant 0 : i32
    %6 = arith.index_cast %c0_i32_6 : i32 to index
    %c0_7 = arith.constant 0 : index
    %c0_8 = arith.constant 0 : index
    %7 = vector.load %arg2[%6, %c0_7, %c0_8] : memref<8x8x128xf32, #tpu.memory_space<vmem>>, vector<1x8x128xf32>
    %8 = vector.shape_cast %7 : vector<1x8x128xf32> to vector<8x128xf32>
    %cst = arith.constant dense<0.000000e+00> : vector<8x64xf32>
    %9 = tpu.matmul %5, %3, %cst {dimension_numbers = #tpu.dot_dimension_numbers<[1], [0], [0], [1], [0, 0, 1, 1], [], []>} : vector<8x32xf32>, vector<32x64xf32>, vector<8x64xf32> -> vector<8x64xf32>
    %10 = vector.extract_strided_slice %8 {offsets = [0, 0], sizes = [8, 64], strides = [1, 1]} : vector<8x128xf32> to vector<8x64xf32>
    %11 = arith.addf %10, %9 : vector<8x64xf32>
    %12 = arith.negf %11 : vector<8x64xf32>
    %13 = math.exp %12 : vector<8x64xf32>
    %cst_9 = arith.constant 1.000000e+00 : f32
    %14 = vector.broadcast %cst_9 : f32 to vector<8x64xf32>
    %15 = arith.addf %14, %13 : vector<8x64xf32>
    %16 = arith.divf %14, %15 : vector<8x64xf32>
    %17 = vector.extract_strided_slice %16 {offsets = [0, 0], sizes = [8, 32], strides = [1, 1]} : vector<8x64xf32> to vector<8x32xf32>
    %18 = vector.extract_strided_slice %16 {offsets = [0, 32], sizes = [8, 32], strides = [1, 1]} : vector<8x64xf32> to vector<8x32xf32>
    %19 = vector.extract_strided_slice %8 {offsets = [0, 64], sizes = [8, 32], strides = [1, 1]} : vector<8x128xf32> to vector<8x32xf32>
    %20 = arith.mulf %18, %5 : vector<8x32xf32>
    %cst_10 = arith.constant dense<0.000000e+00> : vector<8x32xf32>
    %21 = tpu.matmul %20, %4, %cst_10 {dimension_numbers = #tpu.dot_dimension_numbers<[1], [0], [0], [1], [0, 0, 1, 1], [], []>} : vector<8x32xf32>, vector<32x32xf32>, vector<8x32xf32> -> vector<8x32xf32>
    %22 = arith.addf %19, %21 : vector<8x32xf32>
    %23 = math.tanh %22 : vector<8x32xf32>
    %24 = arith.mulf %17, %5 : vector<8x32xf32>
    %cst_11 = arith.constant 1.000000e+00 : f32
    %25 = vector.broadcast %cst_11 : f32 to vector<8x32xf32>
    %26 = arith.subf %25, %17 : vector<8x32xf32>
    %27 = arith.mulf %26, %23 : vector<8x32xf32>
    %28 = arith.addf %24, %27 : vector<8x32xf32>
    %c1_i32 = arith.constant 1 : i32
    %29 = arith.index_cast %c1_i32 : i32 to index
    %c0_12 = arith.constant 0 : index
    %c0_13 = arith.constant 0 : index
    %30 = vector.load %arg2[%29, %c0_12, %c0_13] : memref<8x8x128xf32, #tpu.memory_space<vmem>>, vector<1x8x128xf32>
    %31 = vector.shape_cast %30 : vector<1x8x128xf32> to vector<8x128xf32>
    %cst_14 = arith.constant dense<0.000000e+00> : vector<8x64xf32>
    %32 = tpu.matmul %28, %3, %cst_14 {dimension_numbers = #tpu.dot_dimension_numbers<[1], [0], [0], [1], [0, 0, 1, 1], [], []>} : vector<8x32xf32>, vector<32x64xf32>, vector<8x64xf32> -> vector<8x64xf32>
    %33 = vector.extract_strided_slice %31 {offsets = [0, 0], sizes = [8, 64], strides = [1, 1]} : vector<8x128xf32> to vector<8x64xf32>
    %34 = arith.addf %33, %32 : vector<8x64xf32>
    %35 = arith.negf %34 : vector<8x64xf32>
    %36 = math.exp %35 : vector<8x64xf32>
    %cst_15 = arith.constant 1.000000e+00 : f32
    %37 = vector.broadcast %cst_15 : f32 to vector<8x64xf32>
    %38 = arith.addf %37, %36 : vector<8x64xf32>
    %39 = arith.divf %37, %38 : vector<8x64xf32>
    %40 = vector.extract_strided_slice %39 {offsets = [0, 0], sizes = [8, 32], strides = [1, 1]} : vector<8x64xf32> to vector<8x32xf32>
    %41 = vector.extract_strided_slice %39 {offsets = [0, 32], sizes = [8, 32], strides = [1, 1]} : vector<8x64xf32> to vector<8x32xf32>
    %42 = vector.extract_strided_slice %31 {offsets = [0, 64], sizes = [8, 32], strides = [1, 1]} : vector<8x128xf32> to vector<8x32xf32>
    %43 = arith.mulf %41, %28 : vector<8x32xf32>
    %cst_16 = arith.constant dense<0.000000e+00> : vector<8x32xf32>
    %44 = tpu.matmul %43, %4, %cst_16 {dimension_numbers = #tpu.dot_dimension_numbers<[1], [0], [0], [1], [0, 0, 1, 1], [], []>} : vector<8x32xf32>, vector<32x32xf32>, vector<8x32xf32> -> vector<8x32xf32>
    %45 = arith.addf %42, %44 : vector<8x32xf32>
    %46 = math.tanh %45 : vector<8x32xf32>
    %47 = arith.mulf %40, %28 : vector<8x32xf32>
    %cst_17 = arith.constant 1.000000e+00 : f32
    %48 = vector.broadcast %cst_17 : f32 to vector<8x32xf32>
    %49 = arith.subf %48, %40 : vector<8x32xf32>
    %50 = arith.mulf %49, %46 : vector<8x32xf32>
    %51 = arith.addf %47, %50 : vector<8x32xf32>
    %c2_i32 = arith.constant 2 : i32
    %52 = arith.index_cast %c2_i32 : i32 to index
    %c0_18 = arith.constant 0 : index
    %c0_19 = arith.constant 0 : index
    %53 = vector.load %arg2[%52, %c0_18, %c0_19] : memref<8x8x128xf32, #tpu.memory_space<vmem>>, vector<1x8x128xf32>
    %54 = vector.shape_cast %53 : vector<1x8x128xf32> to vector<8x128xf32>
    %cst_20 = arith.constant dense<0.000000e+00> : vector<8x64xf32>
    %55 = tpu.matmul %51, %3, %cst_20 {dimension_numbers = #tpu.dot_dimension_numbers<[1], [0], [0], [1], [0, 0, 1, 1], [], []>} : vector<8x32xf32>, vector<32x64xf32>, vector<8x64xf32> -> vector<8x64xf32>
    %56 = vector.extract_strided_slice %54 {offsets = [0, 0], sizes = [8, 64], strides = [1, 1]} : vector<8x128xf32> to vector<8x64xf32>
    %57 = arith.addf %56, %55 : vector<8x64xf32>
    %58 = arith.negf %57 : vector<8x64xf32>
    %59 = math.exp %58 : vector<8x64xf32>
    %cst_21 = arith.constant 1.000000e+00 : f32
    %60 = vector.broadcast %cst_21 : f32 to vector<8x64xf32>
    %61 = arith.addf %60, %59 : vector<8x64xf32>
    %62 = arith.divf %60, %61 : vector<8x64xf32>
    %63 = vector.extract_strided_slice %62 {offsets = [0, 0], sizes = [8, 32], strides = [1, 1]} : vector<8x64xf32> to vector<8x32xf32>
    %64 = vector.extract_strided_slice %62 {offsets = [0, 32], sizes = [8, 32], strides = [1, 1]} : vector<8x64xf32> to vector<8x32xf32>
    %65 = vector.extract_strided_slice %54 {offsets = [0, 64], sizes = [8, 32], strides = [1, 1]} : vector<8x128xf32> to vector<8x32xf32>
    %66 = arith.mulf %64, %51 : vector<8x32xf32>
    %cst_22 = arith.constant dense<0.000000e+00> : vector<8x32xf32>
    %67 = tpu.matmul %66, %4, %cst_22 {dimension_numbers = #tpu.dot_dimension_numbers<[1], [0], [0], [1], [0, 0, 1, 1], [], []>} : vector<8x32xf32>, vector<32x32xf32>, vector<8x32xf32> -> vector<8x32xf32>
    %68 = arith.addf %65, %67 : vector<8x32xf32>
    %69 = math.tanh %68 : vector<8x32xf32>
    %70 = arith.mulf %63, %51 : vector<8x32xf32>
    %cst_23 = arith.constant 1.000000e+00 : f32
    %71 = vector.broadcast %cst_23 : f32 to vector<8x32xf32>
    %72 = arith.subf %71, %63 : vector<8x32xf32>
    %73 = arith.mulf %72, %69 : vector<8x32xf32>
    %74 = arith.addf %70, %73 : vector<8x32xf32>
    %c3_i32 = arith.constant 3 : i32
    %75 = arith.index_cast %c3_i32 : i32 to index
    %c0_24 = arith.constant 0 : index
    %c0_25 = arith.constant 0 : index
    %76 = vector.load %arg2[%75, %c0_24, %c0_25] : memref<8x8x128xf32, #tpu.memory_space<vmem>>, vector<1x8x128xf32>
    %77 = vector.shape_cast %76 : vector<1x8x128xf32> to vector<8x128xf32>
    %cst_26 = arith.constant dense<0.000000e+00> : vector<8x64xf32>
    %78 = tpu.matmul %74, %3, %cst_26 {dimension_numbers = #tpu.dot_dimension_numbers<[1], [0], [0], [1], [0, 0, 1, 1], [], []>} : vector<8x32xf32>, vector<32x64xf32>, vector<8x64xf32> -> vector<8x64xf32>
    %79 = vector.extract_strided_slice %77 {offsets = [0, 0], sizes = [8, 64], strides = [1, 1]} : vector<8x128xf32> to vector<8x64xf32>
    %80 = arith.addf %79, %78 : vector<8x64xf32>
    %81 = arith.negf %80 : vector<8x64xf32>
    %82 = math.exp %81 : vector<8x64xf32>
    %cst_27 = arith.constant 1.000000e+00 : f32
    %83 = vector.broadcast %cst_27 : f32 to vector<8x64xf32>
    %84 = arith.addf %83, %82 : vector<8x64xf32>
    %85 = arith.divf %83, %84 : vector<8x64xf32>
    %86 = vector.extract_strided_slice %85 {offsets = [0, 0], sizes = [8, 32], strides = [1, 1]} : vector<8x64xf32> to vector<8x32xf32>
    %87 = vector.extract_strided_slice %85 {offsets = [0, 32], sizes = [8, 32], strides = [1, 1]} : vector<8x64xf32> to vector<8x32xf32>
    %88 = vector.extract_strided_slice %77 {offsets = [0, 64], sizes = [8, 32], strides = [1, 1]} : vector<8x128xf32> to vector<8x32xf32>
    %89 = arith.mulf %87, %74 : vector<8x32xf32>
    %cst_28 = arith.constant dense<0.000000e+00> : vector<8x32xf32>
    %90 = tpu.matmul %89, %4, %cst_28 {dimension_numbers = #tpu.dot_dimension_numbers<[1], [0], [0], [1], [0, 0, 1, 1], [], []>} : vector<8x32xf32>, vector<32x32xf32>, vector<8x32xf32> -> vector<8x32xf32>
    %91 = arith.addf %88, %90 : vector<8x32xf32>
    %92 = math.tanh %91 : vector<8x32xf32>
    %93 = arith.mulf %86, %74 : vector<8x32xf32>
    %cst_29 = arith.constant 1.000000e+00 : f32
    %94 = vector.broadcast %cst_29 : f32 to vector<8x32xf32>
    %95 = arith.subf %94, %86 : vector<8x32xf32>
    %96 = arith.mulf %95, %92 : vector<8x32xf32>
    %97 = arith.addf %93, %96 : vector<8x32xf32>
    %c4_i32 = arith.constant 4 : i32
    %98 = arith.index_cast %c4_i32 : i32 to index
    %c0_30 = arith.constant 0 : index
    %c0_31 = arith.constant 0 : index
    %99 = vector.load %arg2[%98, %c0_30, %c0_31] : memref<8x8x128xf32, #tpu.memory_space<vmem>>, vector<1x8x128xf32>
    %100 = vector.shape_cast %99 : vector<1x8x128xf32> to vector<8x128xf32>
    %cst_32 = arith.constant dense<0.000000e+00> : vector<8x64xf32>
    %101 = tpu.matmul %97, %3, %cst_32 {dimension_numbers = #tpu.dot_dimension_numbers<[1], [0], [0], [1], [0, 0, 1, 1], [], []>} : vector<8x32xf32>, vector<32x64xf32>, vector<8x64xf32> -> vector<8x64xf32>
    %102 = vector.extract_strided_slice %100 {offsets = [0, 0], sizes = [8, 64], strides = [1, 1]} : vector<8x128xf32> to vector<8x64xf32>
    %103 = arith.addf %102, %101 : vector<8x64xf32>
    %104 = arith.negf %103 : vector<8x64xf32>
    %105 = math.exp %104 : vector<8x64xf32>
    %cst_33 = arith.constant 1.000000e+00 : f32
    %106 = vector.broadcast %cst_33 : f32 to vector<8x64xf32>
    %107 = arith.addf %106, %105 : vector<8x64xf32>
    %108 = arith.divf %106, %107 : vector<8x64xf32>
    %109 = vector.extract_strided_slice %108 {offsets = [0, 0], sizes = [8, 32], strides = [1, 1]} : vector<8x64xf32> to vector<8x32xf32>
    %110 = vector.extract_strided_slice %108 {offsets = [0, 32], sizes = [8, 32], strides = [1, 1]} : vector<8x64xf32> to vector<8x32xf32>
    %111 = vector.extract_strided_slice %100 {offsets = [0, 64], sizes = [8, 32], strides = [1, 1]} : vector<8x128xf32> to vector<8x32xf32>
    %112 = arith.mulf %110, %97 : vector<8x32xf32>
    %cst_34 = arith.constant dense<0.000000e+00> : vector<8x32xf32>
    %113 = tpu.matmul %112, %4, %cst_34 {dimension_numbers = #tpu.dot_dimension_numbers<[1], [0], [0], [1], [0, 0, 1, 1], [], []>} : vector<8x32xf32>, vector<32x32xf32>, vector<8x32xf32> -> vector<8x32xf32>
    %114 = arith.addf %111, %113 : vector<8x32xf32>
    %115 = math.tanh %114 : vector<8x32xf32>
    %116 = arith.mulf %109, %97 : vector<8x32xf32>
    %cst_35 = arith.constant 1.000000e+00 : f32
    %117 = vector.broadcast %cst_35 : f32 to vector<8x32xf32>
    %118 = arith.subf %117, %109 : vector<8x32xf32>
    %119 = arith.mulf %118, %115 : vector<8x32xf32>
    %120 = arith.addf %116, %119 : vector<8x32xf32>
    %c5_i32 = arith.constant 5 : i32
    %121 = arith.index_cast %c5_i32 : i32 to index
    %c0_36 = arith.constant 0 : index
    %c0_37 = arith.constant 0 : index
    %122 = vector.load %arg2[%121, %c0_36, %c0_37] : memref<8x8x128xf32, #tpu.memory_space<vmem>>, vector<1x8x128xf32>
    %123 = vector.shape_cast %122 : vector<1x8x128xf32> to vector<8x128xf32>
    %cst_38 = arith.constant dense<0.000000e+00> : vector<8x64xf32>
    %124 = tpu.matmul %120, %3, %cst_38 {dimension_numbers = #tpu.dot_dimension_numbers<[1], [0], [0], [1], [0, 0, 1, 1], [], []>} : vector<8x32xf32>, vector<32x64xf32>, vector<8x64xf32> -> vector<8x64xf32>
    %125 = vector.extract_strided_slice %123 {offsets = [0, 0], sizes = [8, 64], strides = [1, 1]} : vector<8x128xf32> to vector<8x64xf32>
    %126 = arith.addf %125, %124 : vector<8x64xf32>
    %127 = arith.negf %126 : vector<8x64xf32>
    %128 = math.exp %127 : vector<8x64xf32>
    %cst_39 = arith.constant 1.000000e+00 : f32
    %129 = vector.broadcast %cst_39 : f32 to vector<8x64xf32>
    %130 = arith.addf %129, %128 : vector<8x64xf32>
    %131 = arith.divf %129, %130 : vector<8x64xf32>
    %132 = vector.extract_strided_slice %131 {offsets = [0, 0], sizes = [8, 32], strides = [1, 1]} : vector<8x64xf32> to vector<8x32xf32>
    %133 = vector.extract_strided_slice %131 {offsets = [0, 32], sizes = [8, 32], strides = [1, 1]} : vector<8x64xf32> to vector<8x32xf32>
    %134 = vector.extract_strided_slice %123 {offsets = [0, 64], sizes = [8, 32], strides = [1, 1]} : vector<8x128xf32> to vector<8x32xf32>
    %135 = arith.mulf %133, %120 : vector<8x32xf32>
    %cst_40 = arith.constant dense<0.000000e+00> : vector<8x32xf32>
    %136 = tpu.matmul %135, %4, %cst_40 {dimension_numbers = #tpu.dot_dimension_numbers<[1], [0], [0], [1], [0, 0, 1, 1], [], []>} : vector<8x32xf32>, vector<32x32xf32>, vector<8x32xf32> -> vector<8x32xf32>
    %137 = arith.addf %134, %136 : vector<8x32xf32>
    %138 = math.tanh %137 : vector<8x32xf32>
    %139 = arith.mulf %132, %120 : vector<8x32xf32>
    %cst_41 = arith.constant 1.000000e+00 : f32
    %140 = vector.broadcast %cst_41 : f32 to vector<8x32xf32>
    %141 = arith.subf %140, %132 : vector<8x32xf32>
    %142 = arith.mulf %141, %138 : vector<8x32xf32>
    %143 = arith.addf %139, %142 : vector<8x32xf32>
    %c6_i32 = arith.constant 6 : i32
    %144 = arith.index_cast %c6_i32 : i32 to index
    %c0_42 = arith.constant 0 : index
    %c0_43 = arith.constant 0 : index
    %145 = vector.load %arg2[%144, %c0_42, %c0_43] : memref<8x8x128xf32, #tpu.memory_space<vmem>>, vector<1x8x128xf32>
    %146 = vector.shape_cast %145 : vector<1x8x128xf32> to vector<8x128xf32>
    %cst_44 = arith.constant dense<0.000000e+00> : vector<8x64xf32>
    %147 = tpu.matmul %143, %3, %cst_44 {dimension_numbers = #tpu.dot_dimension_numbers<[1], [0], [0], [1], [0, 0, 1, 1], [], []>} : vector<8x32xf32>, vector<32x64xf32>, vector<8x64xf32> -> vector<8x64xf32>
    %148 = vector.extract_strided_slice %146 {offsets = [0, 0], sizes = [8, 64], strides = [1, 1]} : vector<8x128xf32> to vector<8x64xf32>
    %149 = arith.addf %148, %147 : vector<8x64xf32>
    %150 = arith.negf %149 : vector<8x64xf32>
    %151 = math.exp %150 : vector<8x64xf32>
    %cst_45 = arith.constant 1.000000e+00 : f32
    %152 = vector.broadcast %cst_45 : f32 to vector<8x64xf32>
    %153 = arith.addf %152, %151 : vector<8x64xf32>
    %154 = arith.divf %152, %153 : vector<8x64xf32>
    %155 = vector.extract_strided_slice %154 {offsets = [0, 0], sizes = [8, 32], strides = [1, 1]} : vector<8x64xf32> to vector<8x32xf32>
    %156 = vector.extract_strided_slice %154 {offsets = [0, 32], sizes = [8, 32], strides = [1, 1]} : vector<8x64xf32> to vector<8x32xf32>
    %157 = vector.extract_strided_slice %146 {offsets = [0, 64], sizes = [8, 32], strides = [1, 1]} : vector<8x128xf32> to vector<8x32xf32>
    %158 = arith.mulf %156, %143 : vector<8x32xf32>
    %cst_46 = arith.constant dense<0.000000e+00> : vector<8x32xf32>
    %159 = tpu.matmul %158, %4, %cst_46 {dimension_numbers = #tpu.dot_dimension_numbers<[1], [0], [0], [1], [0, 0, 1, 1], [], []>} : vector<8x32xf32>, vector<32x32xf32>, vector<8x32xf32> -> vector<8x32xf32>
    %160 = arith.addf %157, %159 : vector<8x32xf32>
    %161 = math.tanh %160 : vector<8x32xf32>
    %162 = arith.mulf %155, %143 : vector<8x32xf32>
    %cst_47 = arith.constant 1.000000e+00 : f32
    %163 = vector.broadcast %cst_47 : f32 to vector<8x32xf32>
    %164 = arith.subf %163, %155 : vector<8x32xf32>
    %165 = arith.mulf %164, %161 : vector<8x32xf32>
    %166 = arith.addf %162, %165 : vector<8x32xf32>
    %c7_i32 = arith.constant 7 : i32
    %167 = arith.index_cast %c7_i32 : i32 to index
    %c0_48 = arith.constant 0 : index
    %c0_49 = arith.constant 0 : index
    %168 = vector.load %arg2[%167, %c0_48, %c0_49] : memref<8x8x128xf32, #tpu.memory_space<vmem>>, vector<1x8x128xf32>
    %169 = vector.shape_cast %168 : vector<1x8x128xf32> to vector<8x128xf32>
    %cst_50 = arith.constant dense<0.000000e+00> : vector<8x64xf32>
    %170 = tpu.matmul %166, %3, %cst_50 {dimension_numbers = #tpu.dot_dimension_numbers<[1], [0], [0], [1], [0, 0, 1, 1], [], []>} : vector<8x32xf32>, vector<32x64xf32>, vector<8x64xf32> -> vector<8x64xf32>
    %171 = vector.extract_strided_slice %169 {offsets = [0, 0], sizes = [8, 64], strides = [1, 1]} : vector<8x128xf32> to vector<8x64xf32>
    %172 = arith.addf %171, %170 : vector<8x64xf32>
    %173 = arith.negf %172 : vector<8x64xf32>
    %174 = math.exp %173 : vector<8x64xf32>
    %cst_51 = arith.constant 1.000000e+00 : f32
    %175 = vector.broadcast %cst_51 : f32 to vector<8x64xf32>
    %176 = arith.addf %175, %174 : vector<8x64xf32>
    %177 = arith.divf %175, %176 : vector<8x64xf32>
    %178 = vector.extract_strided_slice %177 {offsets = [0, 0], sizes = [8, 32], strides = [1, 1]} : vector<8x64xf32> to vector<8x32xf32>
    %179 = vector.extract_strided_slice %177 {offsets = [0, 32], sizes = [8, 32], strides = [1, 1]} : vector<8x64xf32> to vector<8x32xf32>
    %180 = vector.extract_strided_slice %169 {offsets = [0, 64], sizes = [8, 32], strides = [1, 1]} : vector<8x128xf32> to vector<8x32xf32>
    %181 = arith.mulf %179, %166 : vector<8x32xf32>
    %cst_52 = arith.constant dense<0.000000e+00> : vector<8x32xf32>
    %182 = tpu.matmul %181, %4, %cst_52 {dimension_numbers = #tpu.dot_dimension_numbers<[1], [0], [0], [1], [0, 0, 1, 1], [], []>} : vector<8x32xf32>, vector<32x32xf32>, vector<8x32xf32> -> vector<8x32xf32>
    %183 = arith.addf %180, %182 : vector<8x32xf32>
    %184 = math.tanh %183 : vector<8x32xf32>
    %185 = arith.mulf %178, %166 : vector<8x32xf32>
    %cst_53 = arith.constant 1.000000e+00 : f32
    %186 = vector.broadcast %cst_53 : f32 to vector<8x32xf32>
    %187 = arith.subf %186, %178 : vector<8x32xf32>
    %188 = arith.mulf %187, %184 : vector<8x32xf32>
    %189 = arith.addf %185, %188 : vector<8x32xf32>
    %c8_i32 = arith.constant 8 : i32
    %c0_54 = arith.constant 0 : index
    %c0_55 = arith.constant 0 : index
    %190 = vector.load %arg7[%c0_54, %c0_55] : memref<8x32xf32, #tpu.memory_space<vmem>>, vector<8x32xf32>
    tpu.vector_store %arg7[%c0_54, %c0_55], %189 {strides = array<i32>} : memref<8x32xf32, #tpu.memory_space<vmem>>, vector<8x32xf32>,
    %c0_i32_56 = arith.constant 0 : i32
    %191 = arith.cmpi eq, %arg1, %c0_i32_56 : i32
    %192 = arith.extui %191 : i1 to i32
    %c0_i32_57 = arith.constant 0 : i32
    %193 = arith.cmpi ne, %192, %c0_i32_57 : i32
    scf.if %193 {
      %c0_58 = arith.constant 0 : index
      %c0_59 = arith.constant 0 : index
      %194 = vector.load %arg6[%c0_58, %c0_59] : memref<8x32xf32, #tpu.memory_space<vmem>>, vector<8x32xf32>
      tpu.vector_store %arg6[%c0_58, %c0_59], %189 {strides = array<i32>} : memref<8x32xf32, #tpu.memory_space<vmem>>, vector<8x32xf32>,
    } else {
    }
    return
  }
  func.func @transform_0(%arg0: i32, %arg1: i32) -> (i32, i32, i32) {
    %c0_i32 = arith.constant 0 : i32
    %c0_i32_0 = arith.constant 0 : i32
    return %arg1, %arg0, %c0_i32 : i32, i32, i32
  }
  func.func @transform_1(%arg0: i32, %arg1: i32) -> (i32, i32) {
    %c0_i32 = arith.constant 0 : i32
    %c0_i32_0 = arith.constant 0 : i32
    return %arg0, %c0_i32 : i32, i32
  }
  func.func @transform_2(%arg0: i32, %arg1: i32) -> (i32, i32) {
    %c0_i32 = arith.constant 0 : i32
    %c0_i32_0 = arith.constant 0 : i32
    %c0_i32_1 = arith.constant 0 : i32
    return %c0_i32, %c0_i32_0 : i32, i32
  }
  func.func @transform_3(%arg0: i32, %arg1: i32) -> (i32, i32) {
    %c0_i32 = arith.constant 0 : i32
    %c0_i32_0 = arith.constant 0 : i32
    %c0_i32_1 = arith.constant 0 : i32
    return %c0_i32, %c0_i32_0 : i32, i32
  }
  func.func @transform_4(%arg0: i32, %arg1: i32) -> (i32, i32) {
    %c0_i32 = arith.constant 0 : i32
    %c0_i32_0 = arith.constant 0 : i32
    return %arg0, %c0_i32 : i32, i32
  }
}

</mosaic_0001>

<llo_original>
// kernel: my_gru_pallas.2
$region0: #{my_gru_pallas.2}
  #allocation0 [shape = 'u32[]', space=smem, size = 0x4, offset = 0x4, fixed_abs, tag = 'smem constant byte address 0x4 - core index']
  #allocation1 [shape = 'u32[144,128]{1,0:T(1,128)}', space=vmem, size = 0x12000, scoped, tag = 'internal scratch']
  %s0 = inlined_call_operand.hbm [shape: f32[64,32], index: 0, kind: input, shape index: {}]
  %s1 = inlined_call_operand.hbm [shape: f32[32,128], index: 1, kind: input, shape index: {}]
  %s2 = inlined_call_operand.vmem [shape: f32[1,128], index: 2, kind: input, shape index: {}]
  %s3 = inlined_call_operand.vmem [shape: f32[64,128], index: 3, kind: output, shape index: {}]
  %s4 = sld [smem:[#allocation0]]
  $region30: #{my_gru_pallas.2} parent=0
    _
  %s6 = ssub.s32 1, %s4
  %s7 = scalar_select 0, %s6, %s4
  $region1: #{my_gru_pallas.2} parent=0
    #allocation2 [shape = 'u8[32768]{0}', space=vmem, size = 0x8000, scoped, tag = 'input window, operand 0, single buffered']
    #allocation3 [shape = 's32[1]{0}', space=sflag, size = 0x4, scoped, tag = 'scoped memory for my_gru_pallas.2']
    #allocation4 [shape = 'u8[16384]{0}', space=vmem, size = 0x4000, scoped, tag = 'input window, operand 1, single buffered']
    #allocation5 [shape = 's32[1]{0}', space=sflag, size = 0x4, scoped, tag = 'scoped memory for my_gru_pallas.2']
    %8 = vsyncpa [#allocation3], 0
    %9 = vsyncpa [#allocation5], 0
    // Predicated region
    $region2: #{my_gru_pallas.2} parent=1 // pred_check
      _
    $region3: #{my_gru_pallas.2} parent=1 // pred_check_branch
      %11 = sbr.rel (0) target = $region5
    $region4: #{my_gru_pallas.2} parent=1 // pred_region
      %s13 = ssub.s32 1024, 1024
      %14 = vsyncadd [#allocation3], %s13
      %s15 = sshll.u32 [#allocation2], 4
      %s16 = int_to_ptr.vmem [resolvable:$true] %s15
      %21 = dma.hbm_to_vmem [thread:$0]  %s0, 1024, %s16, [#allocation3], 128, 128, 8
    $region5: #{my_gru_pallas.2} parent=1 // pred_fallthru
      _
    // Predicated region
    $region6: #{my_gru_pallas.2} parent=1 // pred_check
      _
    $region7: #{my_gru_pallas.2} parent=1 // pred_check_branch
      %23 = sbr.rel (0) target = $region9
    $region8: #{my_gru_pallas.2} parent=1 // pred_region
      %s25 = ssub.s32 512, 512
      %26 = vsyncadd [#allocation5], %s25
      %s27 = sshll.u32 [#allocation4], 4
      %s28 = int_to_ptr.vmem [resolvable:$true] %s27
      %33 = dma.hbm_to_vmem [thread:$0]  %s1, 512, %s28, [#allocation5], 128, 128, 8
    $region9: #{my_gru_pallas.2} parent=1 // pred_fallthru
      _
    // Predicated region
    $region10: #{my_gru_pallas.2} parent=1 // pred_check
      _
    $region11: #{my_gru_pallas.2} parent=1 // pred_check_branch
      %35 = sbr.rel (0) target = $region13
    $region12: #{my_gru_pallas.2} parent=1 // pred_region
      _
    $region13: #{my_gru_pallas.2} parent=1 // pred_fallthru
      _
    // Predicated region
    $region14: #{my_gru_pallas.2} parent=1 // pred_check
      _
    $region15: #{my_gru_pallas.2} parent=1 // pred_check_branch
      %37 = sbr.rel (0) target = $region17
    $region16: #{my_gru_pallas.2} parent=1 // pred_region
      %38 = dma.done [#allocation3], 1024
    $region17: #{my_gru_pallas.2} parent=1 // pred_fallthru
      _
    // Predicated region
    $region18: #{my_gru_pallas.2} parent=1 // pred_check
      _
    $region19: #{my_gru_pallas.2} parent=1 // pred_check_branch
      %40 = sbr.rel (0) target = $region21
    $region20: #{my_gru_pallas.2} parent=1 // pred_region
      %41 = dma.done [#allocation5], 512
    $region21: #{my_gru_pallas.2} parent=1 // pred_fallthru
      _
    %v42 = vld [vmem:[#allocation2] sm:$0xff]
    %v43 = vld [vmem:[#allocation2 + $0x8] sm:$0xff]
    %v44 = vld [vmem:[#allocation2 + $0x10] sm:$0xff]
    %v45 = vld [vmem:[#allocation2 + $0x18] sm:$0xff]
    %v46 = vld [vmem:[#allocation2 + $0x20] sm:$0xff]
    %v47 = vld [vmem:[#allocation2 + $0x28] sm:$0xff]
    %v48 = vld [vmem:[#allocation2 + $0x30] sm:$0xff]
    %v49 = vld [vmem:[#allocation2 + $0x38] sm:$0xff]
    %v50 = vld [vmem:[#allocation4] sm:$0xff]
    %v51 = vld [vmem:[#allocation4 + $0x8] sm:$0xff]
    %v52 = vld [vmem:[#allocation4 + $0x10] sm:$0xff]
    %v53 = vld [vmem:[#allocation4 + $0x18] sm:$0xff]
    %v54 = vld [vmem:[%s2] sm:$0x1]
    %v56 = vlaneseq
    %v57 = vshrl.u32 %v56, 7
    %v58 = vsub.s32 0, %v57
    %v59 = vrot.slane %v54, %v58
    %vm61 = vcmask 261120
    %v63 = vsel %vm61, %v42, 0
    %v66 = vsel %vm61, %v43, 0
    %v69 = vsel %vm61, %v44, 0
    %v72 = vsel %vm61, %v45, 0
    %v75 = vsel %vm61, %v46, 0
    %v78 = vsel %vm61, %v47, 0
    %v81 = vsel %vm61, %v48, 0
    %v84 = vsel %vm61, %v49, 0
    %86 = vmatprep.subr.mxu0 0.0
    %87 = vmatpush1.msra.mxu0 %v50
    %88 = vmatprep.subr.mxu0 0.0
    %89 = vmatpush1.msra.mxu0 %v51
    %90 = vmatprep.subr.mxu0 0.0
    %91 = vmatpush1.msra.mxu0 %v52
    %92 = vmatprep.subr.mxu0 0.0
    %93 = vmatpush1.msra.mxu0 %v53
    %94 = vmatprep.subr.mxu0 0.0
    %95 = vmatpush1.msra.mxu0 0.0
    %96 = vmatprep.subr.mxu0 0.0
    %97 = vmatpush1.msra.mxu0 0.0
    %98 = vmatprep.subr.mxu0 0.0
    %99 = vmatpush1.msra.mxu0 0.0
    %100 = vmatprep.subr.mxu0 0.0
    %101 = vmatpush1.msra.mxu0 0.0
    %102 = vmatprep.subr.mxu0 0.0
    %103 = vmatpush1.msra.mxu0 0.0
    %104 = vmatprep.subr.mxu0 0.0
    %105 = vmatpush1.msra.mxu0 0.0
    %106 = vmatprep.subr.mxu0 0.0
    %107 = vmatpush1.msra.mxu0 0.0
    %108 = vmatprep.subr.mxu0 0.0
    %109 = vmatpush1.msra.mxu0 0.0
    %110 = vmatprep.subr.mxu0 0.0
    %111 = vmatpush1.msra.mxu0 0.0
    %112 = vmatprep.subr.mxu0 0.0
    %113 = vmatpush1.msra.mxu0 0.0
    %114 = vmatprep.subr.mxu0 0.0
    %115 = vmatpush1.msra.mxu0 0.0
    %116 = vmatprep.subr.mxu0 0.0
    %117 = vmatpush1.msra.mxu0 0.0
    %118 = vmatprep.subr.mxu0 0.0
    %119 = vmatpush1.msra.mxu0 0.0
    %120 = vmatprep.subr.mxu0 0.0
    %121 = vmatpush1.msra.mxu0 0.0
    %122 = vmatprep.subr.mxu0 0.0
    %123 = vmatpush1.msra.mxu0 0.0
    %124 = vmatprep.subr.mxu0 0.0
    %125 = vmatpush1.msra.mxu0 0.0
    %126 = vmatprep.subr.mxu0 0.0
    %127 = vmatpush1.msra.mxu0 0.0
    %128 = vmatprep.subr.mxu0 0.0
    %129 = vmatpush1.msra.mxu0 0.0
    %130 = vmatprep.subr.mxu0 0.0
    %131 = vmatpush1.msra.mxu0 0.0
    %132 = vmatprep.subr.mxu0 0.0
    %133 = vmatpush1.msra.mxu0 0.0
    %134 = vmatprep.subr.mxu0 0.0
    %135 = vmatpush1.msra.mxu0 0.0
    %136 = vmatprep.subr.mxu0 0.0
    %137 = vmatpush1.msra.mxu0 0.0
    %138 = vmatprep.subr.mxu0 0.0
    %139 = vmatpush1.msra.mxu0 0.0
    %140 = vmatprep.subr.mxu0 0.0
    %141 = vmatpush1.msra.mxu0 0.0
    %142 = vmatprep.subr.mxu0 0.0
    %143 = vmatpush1.msra.mxu0 0.0
    %144 = vmatprep.subr.mxu0 0.0
    %145 = vmatpush1.msra.mxu0 0.0
    %146 = vmatprep.subr.mxu0 0.0
    %147 = vmatpush1.msra.mxu0 0.0
    %148 = vmatprep.subr.mxu0 0.0
    %149 = vmatpush1.msra.mxu0 0.0
    %150 = vmatprep.mubr.f32.mxu0 0.0
    %151 = vmatmul.mubr.f32.gmra.mrb[0].mxu0 %v63
    %v152 = vpop.f32.mrb[0].mxu0
    %v153 = vadd.f32 %v59, %v152
    %v154 = vpop.f32.mrb[0].mxu0
    %155 = vmatprep.mubr.f32.mxu0 0.0
    %156 = vmatmul.mubr.f32.gmra.mrb[0].mxu0 %v66
    %v157 = vpop.f32.mrb[0].mxu0
    %v158 = vadd.f32 %v59, %v157
    %v159 = vpop.f32.mrb[0].mxu0
    %160 = vmatprep.mubr.f32.mxu0 0.0
    %161 = vmatmul.mubr.f32.gmra.mrb[0].mxu0 %v69
    %v162 = vpop.f32.mrb[0].mxu0
    %v163 = vadd.f32 %v59, %v162
    %v164 = vpop.f32.mrb[0].mxu0
    %165 = vmatprep.mubr.f32.mxu0 0.0
    %166 = vmatmul.mubr.f32.gmra.mrb[0].mxu0 %v72
    %v167 = vpop.f32.mrb[0].mxu0
    %v168 = vadd.f32 %v59, %v167
    %v169 = vpop.f32.mrb[0].mxu0
    %170 = vmatprep.mubr.f32.mxu0 0.0
    %171 = vmatmul.mubr.f32.gmra.mrb[0].mxu0 %v75
    %v172 = vpop.f32.mrb[0].mxu0
    %v173 = vadd.f32 %v59, %v172
    %v174 = vpop.f32.mrb[0].mxu0
    %175 = vmatprep.mubr.f32.mxu0 0.0
    %176 = vmatmul.mubr.f32.gmra.mrb[0].mxu0 %v78
    %v177 = vpop.f32.mrb[0].mxu0
    %v178 = vadd.f32 %v59, %v177
    %v179 = vpop.f32.mrb[0].mxu0
    %180 = vmatprep.mubr.f32.mxu0 0.0
    %181 = vmatmul.mubr.f32.gmra.mrb[0].mxu0 %v81
    %v182 = vpop.f32.mrb[0].mxu0
    %v183 = vadd.f32 %v59, %v182
    %v184 = vpop.f32.mrb[0].mxu0
    %185 = vmatprep.mubr.f32.mxu0 0.0
    %186 = vmatmul.mubr.f32.gmra.mrb[0].mxu0 %v84
    %v187 = vpop.f32.mrb[0].mxu0
    %v188 = vadd.f32 %v59, %v187
    %v189 = vpop.f32.mrb[0].mxu0
    %190 = vdwg.mxu0
    %191 = vst [vmem:[%s3] sm:$0xff] %v153
    %192 = vst [vmem:[%s3 + $0x8] sm:$0xff] %v158
    %193 = vst [vmem:[%s3 + $0x10] sm:$0xff] %v163
    %194 = vst [vmem:[%s3 + $0x18] sm:$0xff] %v168
    %195 = vst [vmem:[%s3 + $0x20] sm:$0xff] %v173
    %196 = vst [vmem:[%s3 + $0x28] sm:$0xff] %v178
    %197 = vst [vmem:[%s3 + $0x30] sm:$0xff] %v183
    %198 = vst [vmem:[%s3 + $0x38] sm:$0xff] %v188
    // Predicated region
    $region22: #{my_gru_pallas.2} parent=1 // pred_check
      _
    $region23: #{my_gru_pallas.2} parent=1 // pred_check_branch
      %200 = sbr.rel (0) target = $region25
    $region24: #{my_gru_pallas.2} parent=1 // pred_region
      _
    $region25: #{my_gru_pallas.2} parent=1 // pred_fallthru
      _
    // Predicated region
    $region26: #{my_gru_pallas.2} parent=1 // pred_check
      _
    $region27: #{my_gru_pallas.2} parent=1 // pred_check_branch
      %202 = sbr.rel (0) target = $region29
    $region28: #{my_gru_pallas.2} parent=1 // pred_region
      _
    $region29: #{my_gru_pallas.2} parent=1 // pred_fallthru
      _
    %203 = vsyncpa [#allocation3], 1
    %204 = vsyncpa [#allocation5], 1

// kernel: my_gru_pallas.3
$region0: #{my_gru_pallas.3}
  #allocation0 [shape = 'u32[]', space=smem, size = 0x4, offset = 0x4, fixed_abs, tag = 'smem constant byte address 0x4 - core index']
  #allocation1 [shape = 'u32[144,128]{1,0:T(1,128)}', space=vmem, size = 0x12000, scoped, tag = 'internal scratch']
  #allocation2 [shape = 'f32[8,32]{1,0:T(8,128)}', space=vmem, size = 0x1000, scoped, tag = 'scratch operand']
  %s0 = inlined_call_operand.vmem [shape: f32[8,8,128], index: 0, kind: input, shape index: {}]
  %s1 = inlined_call_operand.vmem [shape: f32[8,32], index: 1, kind: input, shape index: {}]
  %s2 = inlined_call_operand.vmem [shape: f32[32,64], index: 2, kind: input, shape index: {}]
  %s3 = inlined_call_operand.vmem [shape: f32[32,32], index: 3, kind: input, shape index: {}]
  %s4 = inlined_call_operand.hbm [shape: f32[8,32], index: 4, kind: output, shape index: {}]
  %s5 = sld [smem:[#allocation0]]
  $region34: #{my_gru_pallas.3} parent=0
    _
  %s7 = ssub.s32 1, %s5
  %s8 = scalar_select 0, %s7, %s5
  $region1: #{my_gru_pallas.3} parent=0
    #allocation3 [shape = 'u8[4096]{0}', space=vmem, size = 0x1000, scoped, tag = 'output window, operand 0, single buffered']
    #allocation4 [shape = 's32[1]{0}', space=sflag, size = 0x4, scoped, tag = 'scoped memory for my_gru_pallas.3']
    %9 = vsyncpa [#allocation4], 0
    // Predicated region
    $region2: #{my_gru_pallas.3} parent=1 // pred_check
      _
    $region3: #{my_gru_pallas.3} parent=1 // pred_check_branch
      %11 = sbr.rel (0) target = $region5
    $region4: #{my_gru_pallas.3} parent=1 // pred_region
      _
    $region5: #{my_gru_pallas.3} parent=1 // pred_fallthru
      _
    // Predicated region
    $region6: #{my_gru_pallas.3} parent=1 // pred_check
      _
    $region7: #{my_gru_pallas.3} parent=1 // pred_check_branch
      %13 = sbr.rel (0) target = $region9
    $region8: #{my_gru_pallas.3} parent=1 // pred_region
      _
    $region9: #{my_gru_pallas.3} parent=1 // pred_fallthru
      _
    // Predicated region
    $region10: #{my_gru_pallas.3} parent=1 // pred_check
      _
    $region11: #{my_gru_pallas.3} parent=1 // pred_check_branch
      %15 = sbr.rel (0) target = $region13
    $region12: #{my_gru_pallas.3} parent=1 // pred_region
      _
    $region13: #{my_gru_pallas.3} parent=1 // pred_fallthru
      _
    // Predicated region
    $region14: #{my_gru_pallas.3} parent=1 // pred_check
      _
    $region15: #{my_gru_pallas.3} parent=1 // pred_check_branch
      %17 = sbr.rel (0) target = $region17
    $region16: #{my_gru_pallas.3} parent=1 // pred_region
      _
    $region17: #{my_gru_pallas.3} parent=1 // pred_fallthru
      _
    %p18 = scmp.eq.s32.totalorder 0, 0
    // Predicated region
    $region18: #{my_gru_pallas.3} parent=1 // pred_check
      %p19 = pneg %p18
    $region19: #{my_gru_pallas.3} parent=1 // pred_check_branch
      %21 = sbr.rel (%p19) target = $region21
    $region20: #{my_gru_pallas.3} parent=1 // pred_region
      %v22 = vld [vmem:[%s1] sm:$0xff]
      %vm23 = vcmask 261120
      %24 = vst.msk [vmem:[#allocation2] sm:$0xff] %vm23, %v22
    $region21: #{my_gru_pallas.3} parent=1 // pred_fallthru
      _
    %v25 = vld [vmem:[%s2] sm:$0xff]
    %v26 = vld [vmem:[%s2 + $0x8] sm:$0xff]
    %v27 = vld [vmem:[%s2 + $0x10] sm:$0xff]
    %v28 = vld [vmem:[%s2 + $0x18] sm:$0xff]
    %v29 = vld [vmem:[%s3] sm:$0xff]
    %v30 = vld [vmem:[%s3 + $0x8] sm:$0xff]
    %v31 = vld [vmem:[%s3 + $0x10] sm:$0xff]
    %v32 = vld [vmem:[%s3 + $0x18] sm:$0xff]
    %v33 = vld [vmem:[#allocation2] sm:$0xff]
    %v34 = vld [vmem:[%s0] sm:$0xff]
    %vm35 = vcmask 261120
    %v37 = vsel %vm35, %v33, 0
    %39 = vmatprep.subr.mxu0 0.0
    %40 = vmatpush1.msra.mxu0 %v25
    %41 = vmatprep.subr.mxu0 0.0
    %42 = vmatpush1.msra.mxu0 %v26
    %43 = vmatprep.subr.mxu0 0.0
    %44 = vmatpush1.msra.mxu0 %v27
    %45 = vmatprep.subr.mxu0 0.0
    %46 = vmatpush1.msra.mxu0 %v28
    %47 = vmatprep.subr.mxu0 0.0
    %48 = vmatpush1.msra.mxu0 0.0
    %49 = vmatprep.subr.mxu0 0.0
    %50 = vmatpush1.msra.mxu0 0.0
    %51 = vmatprep.subr.mxu0 0.0
    %52 = vmatpush1.msra.mxu0 0.0
    %53 = vmatprep.subr.mxu0 0.0
    %54 = vmatpush1.msra.mxu0 0.0
    %55 = vmatprep.subr.mxu0 0.0
    %56 = vmatpush1.msra.mxu0 0.0
    %57 = vmatprep.subr.mxu0 0.0
    %58 = vmatpush1.msra.mxu0 0.0
    %59 = vmatprep.subr.mxu0 0.0
    %60 = vmatpush1.msra.mxu0 0.0
    %61 = vmatprep.subr.mxu0 0.0
    %62 = vmatpush1.msra.mxu0 0.0
    %63 = vmatprep.subr.mxu0 0.0
    %64 = vmatpush1.msra.mxu0 0.0
    %65 = vmatprep.subr.mxu0 0.0
    %66 = vmatpush1.msra.mxu0 0.0
    %67 = vmatprep.subr.mxu0 0.0
    %68 = vmatpush1.msra.mxu0 0.0
    %69 = vmatprep.subr.mxu0 0.0
    %70 = vmatpush1.msra.mxu0 0.0
    %71 = vmatprep.subr.mxu0 0.0
    %72 = vmatpush1.msra.mxu0 0.0
    %73 = vmatprep.subr.mxu0 0.0
    %74 = vmatpush1.msra.mxu0 0.0
    %75 = vmatprep.subr.mxu0 0.0
    %76 = vmatpush1.msra.mxu0 0.0
    %77 = vmatprep.subr.mxu0 0.0
    %78 = vmatpush1.msra.mxu0 0.0
    %79 = vmatprep.subr.mxu0 0.0
    %80 = vmatpush1.msra.mxu0 0.0
    %81 = vmatprep.subr.mxu0 0.0
    %82 = vmatpush1.msra.mxu0 0.0
    %83 = vmatprep.subr.mxu0 0.0
    %84 = vmatpush1.msra.mxu0 0.0
    %85 = vmatprep.subr.mxu0 0.0
    %86 = vmatpush1.msra.mxu0 0.0
    %87 = vmatprep.subr.mxu0 0.0
    %88 = vmatpush1.msra.mxu0 0.0
    %89 = vmatprep.subr.mxu0 0.0
    %90 = vmatpush1.msra.mxu0 0.0
    %91 = vmatprep.subr.mxu0 0.0
    %92 = vmatpush1.msra.mxu0 0.0
    %93 = vmatprep.subr.mxu0 0.0
    %94 = vmatpush1.msra.mxu0 0.0
    %95 = vmatprep.subr.mxu0 0.0
    %96 = vmatpush1.msra.mxu0 0.0
    %97 = vmatprep.subr.mxu0 0.0
    %98 = vmatpush1.msra.mxu0 0.0
    %99 = vmatprep.subr.mxu0 0.0
    %100 = vmatpush1.msra.mxu0 0.0
    %101 = vmatprep.subr.mxu0 0.0
    %102 = vmatpush1.msra.mxu0 0.0
    %103 = vmatprep.mubr.f32.mxu0 0.0
    %104 = vmatmul.mubr.f32.gmra.mrb[0].mxu0 %v37
    %v105 = vpop.f32.mrb[0].mxu0
    %v106 = vadd.f32 0.0, %v105
    %v107 = vpop.f32.mrb[0].mxu0
    %108 = vdwg.mxu0
    %v109 = vadd.f32 %v34, %v106
    %v110 = vxor.u32 %v109, 2147483648
    %v111 = vmul.f32 %v110, 1.442695
    %v112 = vpow.pop %v111
    %v113 = vadd.f32 %v112, 1.0
    %v114 = vrcp.pop %v113
    %v115 = vmul.f32 1.0, %v114
    %116 = vrot.lane.b32.xlu0 %v33, 32
    %v117 = vpop.permute.xlu0 %116
    %v119 = vmul.f32 %v115, %v117
    %121 = vrot.lane.b32.xlu0 %v119, 96
    %v122 = vpop.permute.xlu0 %121
    %v123 = vsel %vm35, %v122, 0
    %125 = vmatprep.subr.mxu0 0.0
    %126 = vmatpush1.msra.mxu0 %v29
    %127 = vmatprep.subr.mxu0 0.0
    %128 = vmatpush1.msra.mxu0 %v30
    %129 = vmatprep.subr.mxu0 0.0
    %130 = vmatpush1.msra.mxu0 %v31
    %131 = vmatprep.subr.mxu0 0.0
    %132 = vmatpush1.msra.mxu0 %v32
    %133 = vmatprep.subr.mxu0 0.0
    %134 = vmatpush1.msra.mxu0 0.0
    %135 = vmatprep.subr.mxu0 0.0
    %136 = vmatpush1.msra.mxu0 0.0
    %137 = vmatprep.subr.mxu0 0.0
    %138 = vmatpush1.msra.mxu0 0.0
    %139 = vmatprep.subr.mxu0 0.0
    %140 = vmatpush1.msra.mxu0 0.0
    %141 = vmatprep.subr.mxu0 0.0
    %142 = vmatpush1.msra.mxu0 0.0
    %143 = vmatprep.subr.mxu0 0.0
    %144 = vmatpush1.msra.mxu0 0.0
    %145 = vmatprep.subr.mxu0 0.0
    %146 = vmatpush1.msra.mxu0 0.0
    %147 = vmatprep.subr.mxu0 0.0
    %148 = vmatpush1.msra.mxu0 0.0
    %149 = vmatprep.subr.mxu0 0.0
    %150 = vmatpush1.msra.mxu0 0.0
    %151 = vmatprep.subr.mxu0 0.0
    %152 = vmatpush1.msra.mxu0 0.0
    %153 = vmatprep.subr.mxu0 0.0
    %154 = vmatpush1.msra.mxu0 0.0
    %155 = vmatprep.subr.mxu0 0.0
    %156 = vmatpush1.msra.mxu0 0.0
    %157 = vmatprep.subr.mxu0 0.0
    %158 = vmatpush1.msra.mxu0 0.0
    %159 = vmatprep.subr.mxu0 0.0
    %160 = vmatpush1.msra.mxu0 0.0
    %161 = vmatprep.subr.mxu0 0.0
    %162 = vmatpush1.msra.mxu0 0.0
    %163 = vmatprep.subr.mxu0 0.0
    %164 = vmatpush1.msra.mxu0 0.0
    %165 = vmatprep.subr.mxu0 0.0
    %166 = vmatpush1.msra.mxu0 0.0
    %167 = vmatprep.subr.mxu0 0.0
    %168 = vmatpush1.msra.mxu0 0.0
    %169 = vmatprep.subr.mxu0 0.0
    %170 = vmatpush1.msra.mxu0 0.0
    %171 = vmatprep.subr.mxu0 0.0
    %172 = vmatpush1.msra.mxu0 0.0
    %173 = vmatprep.subr.mxu0 0.0
    %174 = vmatpush1.msra.mxu0 0.0
    %175 = vmatprep.subr.mxu0 0.0
    %176 = vmatpush1.msra.mxu0 0.0
    %177 = vmatprep.subr.mxu0 0.0
    %178 = vmatpush1.msra.mxu0 0.0
    %179 = vmatprep.subr.mxu0 0.0
    %180 = vmatpush1.msra.mxu0 0.0
    %181 = vmatprep.subr.mxu0 0.0
    %182 = vmatpush1.msra.mxu0 0.0
    %183 = vmatprep.subr.mxu0 0.0
    %184 = vmatpush1.msra.mxu0 0.0
    %185 = vmatprep.subr.mxu0 0.0
    %186 = vmatpush1.msra.mxu0 0.0
    %187 = vmatprep.subr.mxu0 0.0
    %188 = vmatpush1.msra.mxu0 0.0
    %189 = vmatprep.mubr.f32.mxu0 0.0
    %190 = vmatmul.mubr.f32.gmra.mrb[0].mxu0 %v123
    %v191 = vpop.f32.mrb[0].mxu0
    %v192 = vadd.f32 0.0, %v191
    %v193 = vpop.f32.mrb[0].mxu0
    %194 = vdwg.mxu0
    %196 = vrot.lane.b32.xlu0 %v192, 64
    %v197 = vpop.permute.xlu0 %196
    %v199 = vadd.f32 %v34, %v197
    %v200 = vtanh.pop %v199
    %v201 = vmul.f32 %v115, %v33
    %v202 = vsub.f32 1.0, %v115
    %204 = vrot.lane.b32.xlu0 %v200, 64
    %v205 = vpop.permute.xlu0 %204
    %v207 = vmul.f32 %v202, %v205
    %v208 = vadd.f32 %v201, %v207
    %s209 = scalar_lea.vmem %s0, 8
    %v210 = vld [vmem:[%s209] sm:$0xff]
    %v212 = vsel %vm35, %v208, 0
    %214 = vmatprep.subr.mxu0 0.0
    %215 = vmatpush1.msra.mxu0 %v25
    %216 = vmatprep.subr.mxu0 0.0
    %217 = vmatpush1.msra.mxu0 %v26
    %218 = vmatprep.subr.mxu0 0.0
    %219 = vmatpush1.msra.mxu0 %v27
    %220 = vmatprep.subr.mxu0 0.0
    %221 = vmatpush1.msra.mxu0 %v28
    %222 = vmatprep.subr.mxu0 0.0
    %223 = vmatpush1.msra.mxu0 0.0
    %224 = vmatprep.subr.mxu0 0.0
    %225 = vmatpush1.msra.mxu0 0.0
    %226 = vmatprep.subr.mxu0 0.0
    %227 = vmatpush1.msra.mxu0 0.0
    %228 = vmatprep.subr.mxu0 0.0
    %229 = vmatpush1.msra.mxu0 0.0
    %230 = vmatprep.subr.mxu0 0.0
    %231 = vmatpush1.msra.mxu0 0.0
    %232 = vmatprep.subr.mxu0 0.0
    %233 = vmatpush1.msra.mxu0 0.0
    %234 = vmatprep.subr.mxu0 0.0
    %235 = vmatpush1.msra.mxu0 0.0
    %236 = vmatprep.subr.mxu0 0.0
    %237 = vmatpush1.msra.mxu0 0.0
    %238 = vmatprep.subr.mxu0 0.0
    %239 = vmatpush1.msra.mxu0 0.0
    %240 = vmatprep.subr.mxu0 0.0
    %241 = vmatpush1.msra.mxu0 0.0
    %242 = vmatprep.subr.mxu0 0.0
    %243 = vmatpush1.msra.mxu0 0.0
    %244 = vmatprep.subr.mxu0 0.0
    %245 = vmatpush1.msra.mxu0 0.0
    %246 = vmatprep.subr.mxu0 0.0
    %247 = vmatpush1.msra.mxu0 0.0
    %248 = vmatprep.subr.mxu0 0.0
    %249 = vmatpush1.msra.mxu0 0.0
    %250 = vmatprep.subr.mxu0 0.0
    %251 = vmatpush1.msra.mxu0 0.0
    %252 = vmatprep.subr.mxu0 0.0
    %253 = vmatpush1.msra.mxu0 0.0
    %254 = vmatprep.subr.mxu0 0.0
    %255 = vmatpush1.msra.mxu0 0.0
    %256 = vmatprep.subr.mxu0 0.0
    %257 = vmatpush1.msra.mxu0 0.0
    %258 = vmatprep.subr.mxu0 0.0
    %259 = vmatpush1.msra.mxu0 0.0
    %260 = vmatprep.subr.mxu0 0.0
    %261 = vmatpush1.msra.mxu0 0.0
    %262 = vmatprep.subr.mxu0 0.0
    %263 = vmatpush1.msra.mxu0 0.0
    %264 = vmatprep.subr.mxu0 0.0
    %265 = vmatpush1.msra.mxu0 0.0
    %266 = vmatprep.subr.mxu0 0.0
    %267 = vmatpush1.msra.mxu0 0.0
    %268 = vmatprep.subr.mxu0 0.0
    %269 = vmatpush1.msra.mxu0 0.0
    %270 = vmatprep.subr.mxu0 0.0
    %271 = vmatpush1.msra.mxu0 0.0
    %272 = vmatprep.subr.mxu0 0.0
    %273 = vmatpush1.msra.mxu0 0.0
    %274 = vmatprep.subr.mxu0 0.0
    %275 = vmatpush1.msra.mxu0 0.0
    %276 = vmatprep.subr.mxu0 0.0
    %277 = vmatpush1.msra.mxu0 0.0
    %278 = vmatprep.mubr.f32.mxu0 0.0
    %279 = vmatmul.mubr.f32.gmra.mrb[0].mxu0 %v212
    %v280 = vpop.f32.mrb[0].mxu0
    %v281 = vadd.f32 0.0, %v280
    %v282 = vpop.f32.mrb[0].mxu0
    %283 = vdwg.mxu0
    %v284 = vadd.f32 %v210, %v281
    %v285 = vxor.u32 %v284, 2147483648
    %v286 = vmul.f32 %v285, 1.442695
    %v287 = vpow.pop %v286
    %v288 = vadd.f32 %v287, 1.0
    %v289 = vrcp.pop %v288
    %v290 = vmul.f32 1.0, %v289
    %291 = vrot.lane.b32.xlu0 %v208, 32
    %v292 = vpop.permute.xlu0 %291
    %v294 = vmul.f32 %v290, %v292
    %296 = vrot.lane.b32.xlu0 %v294, 96
    %v297 = vpop.permute.xlu0 %296
    %v298 = vsel %vm35, %v297, 0
    %300 = vmatprep.subr.mxu0 0.0
    %301 = vmatpush1.msra.mxu0 %v29
    %302 = vmatprep.subr.mxu0 0.0
    %303 = vmatpush1.msra.mxu0 %v30
    %304 = vmatprep.subr.mxu0 0.0
    %305 = vmatpush1.msra.mxu0 %v31
    %306 = vmatprep.subr.mxu0 0.0
    %307 = vmatpush1.msra.mxu0 %v32
    %308 = vmatprep.subr.mxu0 0.0
    %309 = vmatpush1.msra.mxu0 0.0
    %310 = vmatprep.subr.mxu0 0.0
    %311 = vmatpush1.msra.mxu0 0.0
    %312 = vmatprep.subr.mxu0 0.0
    %313 = vmatpush1.msra.mxu0 0.0
    %314 = vmatprep.subr.mxu0 0.0
    %315 = vmatpush1.msra.mxu0 0.0
    %316 = vmatprep.subr.mxu0 0.0
    %317 = vmatpush1.msra.mxu0 0.0
    %318 = vmatprep.subr.mxu0 0.0
    %319 = vmatpush1.msra.mxu0 0.0
    %320 = vmatprep.subr.mxu0 0.0
    %321 = vmatpush1.msra.mxu0 0.0
    %322 = vmatprep.subr.mxu0 0.0
    %323 = vmatpush1.msra.mxu0 0.0
    %324 = vmatprep.subr.mxu0 0.0
    %325 = vmatpush1.msra.mxu0 0.0
    %326 = vmatprep.subr.mxu0 0.0
    %327 = vmatpush1.msra.mxu0 0.0
    %328 = vmatprep.subr.mxu0 0.0
    %329 = vmatpush1.msra.mxu0 0.0
    %330 = vmatprep.subr.mxu0 0.0
    %331 = vmatpush1.msra.mxu0 0.0
    %332 = vmatprep.subr.mxu0 0.0
    %333 = vmatpush1.msra.mxu0 0.0
    %334 = vmatprep.subr.mxu0 0.0
    %335 = vmatpush1.msra.mxu0 0.0
    %336 = vmatprep.subr.mxu0 0.0
    %337 = vmatpush1.msra.mxu0 0.0
    %338 = vmatprep.subr.mxu0 0.0
    %339 = vmatpush1.msra.mxu0 0.0
    %340 = vmatprep.subr.mxu0 0.0
    %341 = vmatpush1.msra.mxu0 0.0
    %342 = vmatprep.subr.mxu0 0.0
    %343 = vmatpush1.msra.mxu0 0.0
    %344 = vmatprep.subr.mxu0 0.0
    %345 = vmatpush1.msra.mxu0 0.0
    %346 = vmatprep.subr.mxu0 0.0
    %347 = vmatpush1.msra.mxu0 0.0
    %348 = vmatprep.subr.mxu0 0.0
    %349 = vmatpush1.msra.mxu0 0.0
    %350 = vmatprep.subr.mxu0 0.0
    %351 = vmatpush1.msra.mxu0 0.0
    %352 = vmatprep.subr.mxu0 0.0
    %353 = vmatpush1.msra.mxu0 0.0
    %354 = vmatprep.subr.mxu0 0.0
    %355 = vmatpush1.msra.mxu0 0.0
    %356 = vmatprep.subr.mxu0 0.0
    %357 = vmatpush1.msra.mxu0 0.0
    %358 = vmatprep.subr.mxu0 0.0
    %359 = vmatpush1.msra.mxu0 0.0
    %360 = vmatprep.subr.mxu0 0.0
    %361 = vmatpush1.msra.mxu0 0.0
    %362 = vmatprep.subr.mxu0 0.0
    %363 = vmatpush1.msra.mxu0 0.0
    %364 = vmatprep.mubr.f32.mxu0 0.0
    %365 = vmatmul.mubr.f32.gmra.mrb[0].mxu0 %v298
    %v366 = vpop.f32.mrb[0].mxu0
    %v367 = vadd.f32 0.0, %v366
    %v368 = vpop.f32.mrb[0].mxu0
    %369 = vdwg.mxu0
    %371 = vrot.lane.b32.xlu0 %v367, 64
    %v372 = vpop.permute.xlu0 %371
    %v374 = vadd.f32 %v210, %v372
    %v375 = vtanh.pop %v374
    %v376 = vmul.f32 %v290, %v208
    %v377 = vsub.f32 1.0, %v290
    %379 = vrot.lane.b32.xlu0 %v375, 64
    %v380 = vpop.permute.xlu0 %379
    %v382 = vmul.f32 %v377, %v380
    %v383 = vadd.f32 %v376, %v382
    %s384 = scalar_lea.vmem %s0, 16
    %v385 = vld [vmem:[%s384] sm:$0xff]
    %v387 = vsel %vm35, %v383, 0
    %389 = vmatprep.subr.mxu0 0.0
    %390 = vmatpush1.msra.mxu0 %v25
    %391 = vmatprep.subr.mxu0 0.0
    %392 = vmatpush1.msra.mxu0 %v26
    %393 = vmatprep.subr.mxu0 0.0
    %394 = vmatpush1.msra.mxu0 %v27
    %395 = vmatprep.subr.mxu0 0.0
    %396 = vmatpush1.msra.mxu0 %v28
    %397 = vmatprep.subr.mxu0 0.0
    %398 = vmatpush1.msra.mxu0 0.0
    %399 = vmatprep.subr.mxu0 0.0
    %400 = vmatpush1.msra.mxu0 0.0
    %401 = vmatprep.subr.mxu0 0.0
    %402 = vmatpush1.msra.mxu0 0.0
    %403 = vmatprep.subr.mxu0 0.0
    %404 = vmatpush1.msra.mxu0 0.0
    %405 = vmatprep.subr.mxu0 0.0
    %406 = vmatpush1.msra.mxu0 0.0
    %407 = vmatprep.subr.mxu0 0.0
    %408 = vmatpush1.msra.mxu0 0.0
    %409 = vmatprep.subr.mxu0 0.0
    %410 = vmatpush1.msra.mxu0 0.0
    %411 = vmatprep.subr.mxu0 0.0
    %412 = vmatpush1.msra.mxu0 0.0
    %413 = vmatprep.subr.mxu0 0.0
    %414 = vmatpush1.msra.mxu0 0.0
    %415 = vmatprep.subr.mxu0 0.0
    %416 = vmatpush1.msra.mxu0 0.0
    %417 = vmatprep.subr.mxu0 0.0
    %418 = vmatpush1.msra.mxu0 0.0
    %419 = vmatprep.subr.mxu0 0.0
    %420 = vmatpush1.msra.mxu0 0.0
    %421 = vmatprep.subr.mxu0 0.0
    %422 = vmatpush1.msra.mxu0 0.0
    %423 = vmatprep.subr.mxu0 0.0
    %424 = vmatpush1.msra.mxu0 0.0
    %425 = vmatprep.subr.mxu0 0.0
    %426 = vmatpush1.msra.mxu0 0.0
    %427 = vmatprep.subr.mxu0 0.0
    %428 = vmatpush1.msra.mxu0 0.0
    %429 = vmatprep.subr.mxu0 0.0
    %430 = vmatpush1.msra.mxu0 0.0
    %431 = vmatprep.subr.mxu0 0.0
    %432 = vmatpush1.msra.mxu0 0.0
    %433 = vmatprep.subr.mxu0 0.0
    %434 = vmatpush1.msra.mxu0 0.0
    %435 = vmatprep.subr.mxu0 0.0
    %436 = vmatpush1.msra.mxu0 0.0
    %437 = vmatprep.subr.mxu0 0.0
    %438 = vmatpush1.msra.mxu0 0.0
    %439 = vmatprep.subr.mxu0 0.0
    %440 = vmatpush1.msra.mxu0 0.0
    %441 = vmatprep.subr.mxu0 0.0
    %442 = vmatpush1.msra.mxu0 0.0
    %443 = vmatprep.subr.mxu0 0.0
    %444 = vmatpush1.msra.mxu0 0.0
    %445 = vmatprep.subr.mxu0 0.0
    %446 = vmatpush1.msra.mxu0 0.0
    %447 = vmatprep.subr.mxu0 0.0
    %448 = vmatpush1.msra.mxu0 0.0
    %449 = vmatprep.subr.mxu0 0.0
    %450 = vmatpush1.msra.mxu0 0.0
    %451 = vmatprep.subr.mxu0 0.0
    %452 = vmatpush1.msra.mxu0 0.0
    %453 = vmatprep.mubr.f32.mxu0 0.0
    %454 = vmatmul.mubr.f32.gmra.mrb[0].mxu0 %v387
    %v455 = vpop.f32.mrb[0].mxu0
    %v456 = vadd.f32 0.0, %v455
    %v457 = vpop.f32.mrb[0].mxu0
    %458 = vdwg.mxu0
    %v459 = vadd.f32 %v385, %v456
    %v460 = vxor.u32 %v459, 2147483648
    %v461 = vmul.f32 %v460, 1.442695
    %v462 = vpow.pop %v461
    %v463 = vadd.f32 %v462, 1.0
    %v464 = vrcp.pop %v463
    %v465 = vmul.f32 1.0, %v464
    %466 = vrot.lane.b32.xlu0 %v383, 32
    %v467 = vpop.permute.xlu0 %466
    %v469 = vmul.f32 %v465, %v467
    %471 = vrot.lane.b32.xlu0 %v469, 96
    %v472 = vpop.permute.xlu0 %471
    %v473 = vsel %vm35, %v472, 0
    %475 = vmatprep.subr.mxu0 0.0
    %476 = vmatpush1.msra.mxu0 %v29
    %477 = vmatprep.subr.mxu0 0.0
    %478 = vmatpush1.msra.mxu0 %v30
    %479 = vmatprep.subr.mxu0 0.0
    %480 = vmatpush1.msra.mxu0 %v31
    %481 = vmatprep.subr.mxu0 0.0
    %482 = vmatpush1.msra.mxu0 %v32
    %483 = vmatprep.subr.mxu0 0.0
    %484 = vmatpush1.msra.mxu0 0.0
    %485 = vmatprep.subr.mxu0 0.0
    %486 = vmatpush1.msra.mxu0 0.0
    %487 = vmatprep.subr.mxu0 0.0
    %488 = vmatpush1.msra.mxu0 0.0
    %489 = vmatprep.subr.mxu0 0.0
    %490 = vmatpush1.msra.mxu0 0.0
    %491 = vmatprep.subr.mxu0 0.0
    %492 = vmatpush1.msra.mxu0 0.0
    %493 = vmatprep.subr.mxu0 0.0
    %494 = vmatpush1.msra.mxu0 0.0
    %495 = vmatprep.subr.mxu0 0.0
    %496 = vmatpush1.msra.mxu0 0.0
    %497 = vmatprep.subr.mxu0 0.0
    %498 = vmatpush1.msra.mxu0 0.0
    %499 = vmatprep.subr.mxu0 0.0
    %500 = vmatpush1.msra.mxu0 0.0
    %501 = vmatprep.subr.mxu0 0.0
    %502 = vmatpush1.msra.mxu0 0.0
    %503 = vmatprep.subr.mxu0 0.0
    %504 = vmatpush1.msra.mxu0 0.0
    %505 = vmatprep.subr.mxu0 0.0
    %506 = vmatpush1.msra.mxu0 0.0
    %507 = vmatprep.subr.mxu0 0.0
    %508 = vmatpush1.msra.mxu0 0.0
    %509 = vmatprep.subr.mxu0 0.0
    %510 = vmatpush1.msra.mxu0 0.0
    %511 = vmatprep.subr.mxu0 0.0
    %512 = vmatpush1.msra.mxu0 0.0
    %513 = vmatprep.subr.mxu0 0.0
    %514 = vmatpush1.msra.mxu0 0.0
    %515 = vmatprep.subr.mxu0 0.0
    %516 = vmatpush1.msra.mxu0 0.0
    %517 = vmatprep.subr.mxu0 0.0
    %518 = vmatpush1.msra.mxu0 0.0
    %519 = vmatprep.subr.mxu0 0.0
    %520 = vmatpush1.msra.mxu0 0.0
    %521 = vmatprep.subr.mxu0 0.0
    %522 = vmatpush1.msra.mxu0 0.0
    %523 = vmatprep.subr.mxu0 0.0
    %524 = vmatpush1.msra.mxu0 0.0
    %525 = vmatprep.subr.mxu0 0.0
    %526 = vmatpush1.msra.mxu0 0.0
    %527 = vmatprep.subr.mxu0 0.0
    %528 = vmatpush1.msra.mxu0 0.0
    %529 = vmatprep.subr.mxu0 0.0
    %530 = vmatpush1.msra.mxu0 0.0
    %531 = vmatprep.subr.mxu0 0.0
    %532 = vmatpush1.msra.mxu0 0.0
    %533 = vmatprep.subr.mxu0 0.0
    %534 = vmatpush1.msra.mxu0 0.0
    %535 = vmatprep.subr.mxu0 0.0
    %536 = vmatpush1.msra.mxu0 0.0
    %537 = vmatprep.subr.mxu0 0.0
    %538 = vmatpush1.msra.mxu0 0.0
    %539 = vmatprep.mubr.f32.mxu0 0.0
    %540 = vmatmul.mubr.f32.gmra.mrb[0].mxu0 %v473
    %v541 = vpop.f32.mrb[0].mxu0
    %v542 = vadd.f32 0.0, %v541
    %v543 = vpop.f32.mrb[0].mxu0
    %544 = vdwg.mxu0
    %546 = vrot.lane.b32.xlu0 %v542, 64
    %v547 = vpop.permute.xlu0 %546
    %v549 = vadd.f32 %v385, %v547
    %v550 = vtanh.pop %v549
    %v551 = vmul.f32 %v465, %v383
    %v552 = vsub.f32 1.0, %v465
    %554 = vrot.lane.b32.xlu0 %v550, 64
    %v555 = vpop.permute.xlu0 %554
    %v557 = vmul.f32 %v552, %v555
    %v558 = vadd.f32 %v551, %v557
    %s559 = scalar_lea.vmem %s0, 24
    %v560 = vld [vmem:[%s559] sm:$0xff]
    %v562 = vsel %vm35, %v558, 0
    %564 = vmatprep.subr.mxu0 0.0
    %565 = vmatpush1.msra.mxu0 %v25
    %566 = vmatprep.subr.mxu0 0.0
    %567 = vmatpush1.msra.mxu0 %v26
    %568 = vmatprep.subr.mxu0 0.0
    %569 = vmatpush1.msra.mxu0 %v27
    %570 = vmatprep.subr.mxu0 0.0
    %571 = vmatpush1.msra.mxu0 %v28
    %572 = vmatprep.subr.mxu0 0.0
    %573 = vmatpush1.msra.mxu0 0.0
    %574 = vmatprep.subr.mxu0 0.0
    %575 = vmatpush1.msra.mxu0 0.0
    %576 = vmatprep.subr.mxu0 0.0
    %577 = vmatpush1.msra.mxu0 0.0
    %578 = vmatprep.subr.mxu0 0.0
    %579 = vmatpush1.msra.mxu0 0.0
    %580 = vmatprep.subr.mxu0 0.0
    %581 = vmatpush1.msra.mxu0 0.0
    %582 = vmatprep.subr.mxu0 0.0
    %583 = vmatpush1.msra.mxu0 0.0
    %584 = vmatprep.subr.mxu0 0.0
    %585 = vmatpush1.msra.mxu0 0.0
    %586 = vmatprep.subr.mxu0 0.0
    %587 = vmatpush1.msra.mxu0 0.0
    %588 = vmatprep.subr.mxu0 0.0
    %589 = vmatpush1.msra.mxu0 0.0
    %590 = vmatprep.subr.mxu0 0.0
    %591 = vmatpush1.msra.mxu0 0.0
    %592 = vmatprep.subr.mxu0 0.0
    %593 = vmatpush1.msra.mxu0 0.0
    %594 = vmatprep.subr.mxu0 0.0
    %595 = vmatpush1.msra.mxu0 0.0
    %596 = vmatprep.subr.mxu0 0.0
    %597 = vmatpush1.msra.mxu0 0.0
    %598 = vmatprep.subr.mxu0 0.0
    %599 = vmatpush1.msra.mxu0 0.0
    %600 = vmatprep.subr.mxu0 0.0
    %601 = vmatpush1.msra.mxu0 0.0
    %602 = vmatprep.subr.mxu0 0.0
    %603 = vmatpush1.msra.mxu0 0.0
    %604 = vmatprep.subr.mxu0 0.0
    %605 = vmatpush1.msra.mxu0 0.0
    %606 = vmatprep.subr.mxu0 0.0
    %607 = vmatpush1.msra.mxu0 0.0
    %608 = vmatprep.subr.mxu0 0.0
    %609 = vmatpush1.msra.mxu0 0.0
    %610 = vmatprep.subr.mxu0 0.0
    %611 = vmatpush1.msra.mxu0 0.0
    %612 = vmatprep.subr.mxu0 0.0
    %613 = vmatpush1.msra.mxu0 0.0
    %614 = vmatprep.subr.mxu0 0.0
    %615 = vmatpush1.msra.mxu0 0.0
    %616 = vmatprep.subr.mxu0 0.0
    %617 = vmatpush1.msra.mxu0 0.0
    %618 = vmatprep.subr.mxu0 0.0
    %619 = vmatpush1.msra.mxu0 0.0
    %620 = vmatprep.subr.mxu0 0.0
    %621 = vmatpush1.msra.mxu0 0.0
    %622 = vmatprep.subr.mxu0 0.0
    %623 = vmatpush1.msra.mxu0 0.0
    %624 = vmatprep.subr.mxu0 0.0
    %625 = vmatpush1.msra.mxu0 0.0
    %626 = vmatprep.subr.mxu0 0.0
    %627 = vmatpush1.msra.mxu0 0.0
    %628 = vmatprep.mubr.f32.mxu0 0.0
    %629 = vmatmul.mubr.f32.gmra.mrb[0].mxu0 %v562
    %v630 = vpop.f32.mrb[0].mxu0
    %v631 = vadd.f32 0.0, %v630
    %v632 = vpop.f32.mrb[0].mxu0
    %633 = vdwg.mxu0
    %v634 = vadd.f32 %v560, %v631
    %v635 = vxor.u32 %v634, 2147483648
    %v636 = vmul.f32 %v635, 1.442695
    %v637 = vpow.pop %v636
    %v638 = vadd.f32 %v637, 1.0
    %v639 = vrcp.pop %v638
    %v640 = vmul.f32 1.0, %v639
    %641 = vrot.lane.b32.xlu0 %v558, 32
    %v642 = vpop.permute.xlu0 %641
    %v644 = vmul.f32 %v640, %v642
    %646 = vrot.lane.b32.xlu0 %v644, 96
    %v647 = vpop.permute.xlu0 %646
    %v648 = vsel %vm35, %v647, 0
    %650 = vmatprep.subr.mxu0 0.0
    %651 = vmatpush1.msra.mxu0 %v29
    %652 = vmatprep.subr.mxu0 0.0
    %653 = vmatpush1.msra.mxu0 %v30
    %654 = vmatprep.subr.mxu0 0.0
    %655 = vmatpush1.msra.mxu0 %v31
    %656 = vmatprep.subr.mxu0 0.0
    %657 = vmatpush1.msra.mxu0 %v32
    %658 = vmatprep.subr.mxu0 0.0
    %659 = vmatpush1.msra.mxu0 0.0
    %660 = vmatprep.subr.mxu0 0.0
    %661 = vmatpush1.msra.mxu0 0.0
    %662 = vmatprep.subr.mxu0 0.0
    %663 = vmatpush1.msra.mxu0 0.0
    %664 = vmatprep.subr.mxu0 0.0
    %665 = vmatpush1.msra.mxu0 0.0
    %666 = vmatprep.subr.mxu0 0.0
    %667 = vmatpush1.msra.mxu0 0.0
    %668 = vmatprep.subr.mxu0 0.0
    %669 = vmatpush1.msra.mxu0 0.0
    %670 = vmatprep.subr.mxu0 0.0
    %671 = vmatpush1.msra.mxu0 0.0
    %672 = vmatprep.subr.mxu0 0.0
    %673 = vmatpush1.msra.mxu0 0.0
    %674 = vmatprep.subr.mxu0 0.0
    %675 = vmatpush1.msra.mxu0 0.0
    %676 = vmatprep.subr.mxu0 0.0
    %677 = vmatpush1.msra.mxu0 0.0
    %678 = vmatprep.subr.mxu0 0.0
    %679 = vmatpush1.msra.mxu0 0.0
    %680 = vmatprep.subr.mxu0 0.0
    %681 = vmatpush1.msra.mxu0 0.0
    %682 = vmatprep.subr.mxu0 0.0
    %683 = vmatpush1.msra.mxu0 0.0
    %684 = vmatprep.subr.mxu0 0.0
    %685 = vmatpush1.msra.mxu0 0.0
    %686 = vmatprep.subr.mxu0 0.0
    %687 = vmatpush1.msra.mxu0 0.0
    %688 = vmatprep.subr.mxu0 0.0
    %689 = vmatpush1.msra.mxu0 0.0
    %690 = vmatprep.subr.mxu0 0.0
    %691 = vmatpush1.msra.mxu0 0.0
    %692 = vmatprep.subr.mxu0 0.0
    %693 = vmatpush1.msra.mxu0 0.0
    %694 = vmatprep.subr.mxu0 0.0
    %695 = vmatpush1.msra.mxu0 0.0
    %696 = vmatprep.subr.mxu0 0.0
    %697 = vmatpush1.msra.mxu0 0.0
    %698 = vmatprep.subr.mxu0 0.0
    %699 = vmatpush1.msra.mxu0 0.0
    %700 = vmatprep.subr.mxu0 0.0
    %701 = vmatpush1.msra.mxu0 0.0
    %702 = vmatprep.subr.mxu0 0.0
    %703 = vmatpush1.msra.mxu0 0.0
    %704 = vmatprep.subr.mxu0 0.0
    %705 = vmatpush1.msra.mxu0 0.0
    %706 = vmatprep.subr.mxu0 0.0
    %707 = vmatpush1.msra.mxu0 0.0
    %708 = vmatprep.subr.mxu0 0.0
    %709 = vmatpush1.msra.mxu0 0.0
    %710 = vmatprep.subr.mxu0 0.0
    %711 = vmatpush1.msra.mxu0 0.0
    %712 = vmatprep.subr.mxu0 0.0
    %713 = vmatpush1.msra.mxu0 0.0
    %714 = vmatprep.mubr.f32.mxu0 0.0
    %715 = vmatmul.mubr.f32.gmra.mrb[0].mxu0 %v648
    %v716 = vpop.f32.mrb[0].mxu0
    %v717 = vadd.f32 0.0, %v716
    %v718 = vpop.f32.mrb[0].mxu0
    %719 = vdwg.mxu0
    %721 = vrot.lane.b32.xlu0 %v717, 64
    %v722 = vpop.permute.xlu0 %721
    %v724 = vadd.f32 %v560, %v722
    %v725 = vtanh.pop %v724
    %v726 = vmul.f32 %v640, %v558
    %v727 = vsub.f32 1.0, %v640
    %729 = vrot.lane.b32.xlu0 %v725, 64
    %v730 = vpop.permute.xlu0 %729
    %v732 = vmul.f32 %v727, %v730
    %v733 = vadd.f32 %v726, %v732
    %s734 = scalar_lea.vmem %s0, 32
    %v735 = vld [vmem:[%s734] sm:$0xff]
    %v737 = vsel %vm35, %v733, 0
    %739 = vmatprep.subr.mxu0 0.0
    %740 = vmatpush1.msra.mxu0 %v25
    %741 = vmatprep.subr.mxu0 0.0
    %742 = vmatpush1.msra.mxu0 %v26
    %743 = vmatprep.subr.mxu0 0.0
    %744 = vmatpush1.msra.mxu0 %v27
    %745 = vmatprep.subr.mxu0 0.0
    %746 = vmatpush1.msra.mxu0 %v28
    %747 = vmatprep.subr.mxu0 0.0
    %748 = vmatpush1.msra.mxu0 0.0
    %749 = vmatprep.subr.mxu0 0.0
    %750 = vmatpush1.msra.mxu0 0.0
    %751 = vmatprep.subr.mxu0 0.0
    %752 = vmatpush1.msra.mxu0 0.0
    %753 = vmatprep.subr.mxu0 0.0
    %754 = vmatpush1.msra.mxu0 0.0
    %755 = vmatprep.subr.mxu0 0.0
    %756 = vmatpush1.msra.mxu0 0.0
    %757 = vmatprep.subr.mxu0 0.0
    %758 = vmatpush1.msra.mxu0 0.0
    %759 = vmatprep.subr.mxu0 0.0
    %760 = vmatpush1.msra.mxu0 0.0
    %761 = vmatprep.subr.mxu0 0.0
    %762 = vmatpush1.msra.mxu0 0.0
    %763 = vmatprep.subr.mxu0 0.0
    %764 = vmatpush1.msra.mxu0 0.0
    %765 = vmatprep.subr.mxu0 0.0
    %766 = vmatpush1.msra.mxu0 0.0
    %767 = vmatprep.subr.mxu0 0.0
    %768 = vmatpush1.msra.mxu0 0.0
    %769 = vmatprep.subr.mxu0 0.0
    %770 = vmatpush1.msra.mxu0 0.0
    %771 = vmatprep.subr.mxu0 0.0
    %772 = vmatpush1.msra.mxu0 0.0
    %773 = vmatprep.subr.mxu0 0.0
    %774 = vmatpush1.msra.mxu0 0.0
    %775 = vmatprep.subr.mxu0 0.0
    %776 = vmatpush1.msra.mxu0 0.0
    %777 = vmatprep.subr.mxu0 0.0
    %778 = vmatpush1.msra.mxu0 0.0
    %779 = vmatprep.subr.mxu0 0.0
    %780 = vmatpush1.msra.mxu0 0.0
    %781 = vmatprep.subr.mxu0 0.0
    %782 = vmatpush1.msra.mxu0 0.0
    %783 = vmatprep.subr.mxu0 0.0
    %784 = vmatpush1.msra.mxu0 0.0
    %785 = vmatprep.subr.mxu0 0.0
    %786 = vmatpush1.msra.mxu0 0.0
    %787 = vmatprep.subr.mxu0 0.0
    %788 = vmatpush1.msra.mxu0 0.0
    %789 = vmatprep.subr.mxu0 0.0
    %790 = vmatpush1.msra.mxu0 0.0
    %791 = vmatprep.subr.mxu0 0.0
    %792 = vmatpush1.msra.mxu0 0.0
    %793 = vmatprep.subr.mxu0 0.0
    %794 = vmatpush1.msra.mxu0 0.0
    %795 = vmatprep.subr.mxu0 0.0
    %796 = vmatpush1.msra.mxu0 0.0
    %797 = vmatprep.subr.mxu0 0.0
    %798 = vmatpush1.msra.mxu0 0.0
    %799 = vmatprep.subr.mxu0 0.0
    %800 = vmatpush1.msra.mxu0 0.0
    %801 = vmatprep.subr.mxu0 0.0
    %802 = vmatpush1.msra.mxu0 0.0
    %803 = vmatprep.mubr.f32.mxu0 0.0
    %804 = vmatmul.mubr.f32.gmra.mrb[0].mxu0 %v737
    %v805 = vpop.f32.mrb[0].mxu0
    %v806 = vadd.f32 0.0, %v805
    %v807 = vpop.f32.mrb[0].mxu0
    %808 = vdwg.mxu0
    %v809 = vadd.f32 %v735, %v806
    %v810 = vxor.u32 %v809, 2147483648
    %v811 = vmul.f32 %v810, 1.442695
    %v812 = vpow.pop %v811
    %v813 = vadd.f32 %v812, 1.0
    %v814 = vrcp.pop %v813
    %v815 = vmul.f32 1.0, %v814
    %816 = vrot.lane.b32.xlu0 %v733, 32
    %v817 = vpop.permute.xlu0 %816
    %v819 = vmul.f32 %v815, %v817
    %821 = vrot.lane.b32.xlu0 %v819, 96
    %v822 = vpop.permute.xlu0 %821
    %v823 = vsel %vm35, %v822, 0
    %825 = vmatprep.subr.mxu0 0.0
    %826 = vmatpush1.msra.mxu0 %v29
    %827 = vmatprep.subr.mxu0 0.0
    %828 = vmatpush1.msra.mxu0 %v30
    %829 = vmatprep.subr.mxu0 0.0
    %830 = vmatpush1.msra.mxu0 %v31
    %831 = vmatprep.subr.mxu0 0.0
    %832 = vmatpush1.msra.mxu0 %v32
    %833 = vmatprep.subr.mxu0 0.0
    %834 = vmatpush1.msra.mxu0 0.0
    %835 = vmatprep.subr.mxu0 0.0
    %836 = vmatpush1.msra.mxu0 0.0
    %837 = vmatprep.subr.mxu0 0.0
    %838 = vmatpush1.msra.mxu0 0.0
    %839 = vmatprep.subr.mxu0 0.0
    %840 = vmatpush1.msra.mxu0 0.0
    %841 = vmatprep.subr.mxu0 0.0
    %842 = vmatpush1.msra.mxu0 0.0
    %843 = vmatprep.subr.mxu0 0.0
    %844 = vmatpush1.msra.mxu0 0.0
    %845 = vmatprep.subr.mxu0 0.0
    %846 = vmatpush1.msra.mxu0 0.0
    %847 = vmatprep.subr.mxu0 0.0
    %848 = vmatpush1.msra.mxu0 0.0
    %849 = vmatprep.subr.mxu0 0.0
    %850 = vmatpush1.msra.mxu0 0.0
    %851 = vmatprep.subr.mxu0 0.0
    %852 = vmatpush1.msra.mxu0 0.0
    %853 = vmatprep.subr.mxu0 0.0
    %854 = vmatpush1.msra.mxu0 0.0
    %855 = vmatprep.subr.mxu0 0.0
    %856 = vmatpush1.msra.mxu0 0.0
    %857 = vmatprep.subr.mxu0 0.0
    %858 = vmatpush1.msra.mxu0 0.0
    %859 = vmatprep.subr.mxu0 0.0
    %860 = vmatpush1.msra.mxu0 0.0
    %861 = vmatprep.subr.mxu0 0.0
    %862 = vmatpush1.msra.mxu0 0.0
    %863 = vmatprep.subr.mxu0 0.0
    %864 = vmatpush1.msra.mxu0 0.0
    %865 = vmatprep.subr.mxu0 0.0
    %866 = vmatpush1.msra.mxu0 0.0
    %867 = vmatprep.subr.mxu0 0.0
    %868 = vmatpush1.msra.mxu0 0.0
    %869 = vmatprep.subr.mxu0 0.0
    %870 = vmatpush1.msra.mxu0 0.0
    %871 = vmatprep.subr.mxu0 0.0
    %872 = vmatpush1.msra.mxu0 0.0
    %873 = vmatprep.subr.mxu0 0.0
    %874 = vmatpush1.msra.mxu0 0.0
    %875 = vmatprep.subr.mxu0 0.0
    %876 = vmatpush1.msra.mxu0 0.0
    %877 = vmatprep.subr.mxu0 0.0
    %878 = vmatpush1.msra.mxu0 0.0
    %879 = vmatprep.subr.mxu0 0.0
    %880 = vmatpush1.msra.mxu0 0.0
    %881 = vmatprep.subr.mxu0 0.0
    %882 = vmatpush1.msra.mxu0 0.0
    %883 = vmatprep.subr.mxu0 0.0
    %884 = vmatpush1.msra.mxu0 0.0
    %885 = vmatprep.subr.mxu0 0.0
    %886 = vmatpush1.msra.mxu0 0.0
    %887 = vmatprep.subr.mxu0 0.0
    %888 = vmatpush1.msra.mxu0 0.0
    %889 = vmatprep.mubr.f32.mxu0 0.0
    %890 = vmatmul.mubr.f32.gmra.mrb[0].mxu0 %v823
    %v891 = vpop.f32.mrb[0].mxu0
    %v892 = vadd.f32 0.0, %v891
    %v893 = vpop.f32.mrb[0].mxu0
    %894 = vdwg.mxu0
    %896 = vrot.lane.b32.xlu0 %v892, 64
    %v897 = vpop.permute.xlu0 %896
    %v899 = vadd.f32 %v735, %v897
    %v900 = vtanh.pop %v899
    %v901 = vmul.f32 %v815, %v733
    %v902 = vsub.f32 1.0, %v815
    %904 = vrot.lane.b32.xlu0 %v900, 64
    %v905 = vpop.permute.xlu0 %904
    %v907 = vmul.f32 %v902, %v905
    %v908 = vadd.f32 %v901, %v907
    %s909 = scalar_lea.vmem %s0, 40
    %v910 = vld [vmem:[%s909] sm:$0xff]
    %v912 = vsel %vm35, %v908, 0
    %914 = vmatprep.subr.mxu0 0.0
    %915 = vmatpush1.msra.mxu0 %v25
    %916 = vmatprep.subr.mxu0 0.0
    %917 = vmatpush1.msra.mxu0 %v26
    %918 = vmatprep.subr.mxu0 0.0
    %919 = vmatpush1.msra.mxu0 %v27
    %920 = vmatprep.subr.mxu0 0.0
    %921 = vmatpush1.msra.mxu0 %v28
    %922 = vmatprep.subr.mxu0 0.0
    %923 = vmatpush1.msra.mxu0 0.0
    %924 = vmatprep.subr.mxu0 0.0
    %925 = vmatpush1.msra.mxu0 0.0
    %926 = vmatprep.subr.mxu0 0.0
    %927 = vmatpush1.msra.mxu0 0.0
    %928 = vmatprep.subr.mxu0 0.0
    %929 = vmatpush1.msra.mxu0 0.0
    %930 = vmatprep.subr.mxu0 0.0
    %931 = vmatpush1.msra.mxu0 0.0
    %932 = vmatprep.subr.mxu0 0.0
    %933 = vmatpush1.msra.mxu0 0.0
    %934 = vmatprep.subr.mxu0 0.0
    %935 = vmatpush1.msra.mxu0 0.0
    %936 = vmatprep.subr.mxu0 0.0
    %937 = vmatpush1.msra.mxu0 0.0
    %938 = vmatprep.subr.mxu0 0.0
    %939 = vmatpush1.msra.mxu0 0.0
    %940 = vmatprep.subr.mxu0 0.0
    %941 = vmatpush1.msra.mxu0 0.0
    %942 = vmatprep.subr.mxu0 0.0
    %943 = vmatpush1.msra.mxu0 0.0
    %944 = vmatprep.subr.mxu0 0.0
    %945 = vmatpush1.msra.mxu0 0.0
    %946 = vmatprep.subr.mxu0 0.0
    %947 = vmatpush1.msra.mxu0 0.0
    %948 = vmatprep.subr.mxu0 0.0
    %949 = vmatpush1.msra.mxu0 0.0
    %950 = vmatprep.subr.mxu0 0.0
    %951 = vmatpush1.msra.mxu0 0.0
    %952 = vmatprep.subr.mxu0 0.0
    %953 = vmatpush1.msra.mxu0 0.0
    %954 = vmatprep.subr.mxu0 0.0
    %955 = vmatpush1.msra.mxu0 0.0
    %956 = vmatprep.subr.mxu0 0.0
    %957 = vmatpush1.msra.mxu0 0.0
    %958 = vmatprep.subr.mxu0 0.0
    %959 = vmatpush1.msra.mxu0 0.0
    %960 = vmatprep.subr.mxu0 0.0
    %961 = vmatpush1.msra.mxu0 0.0
    %962 = vmatprep.subr.mxu0 0.0
    %963 = vmatpush1.msra.mxu0 0.0
    %964 = vmatprep.subr.mxu0 0.0
    %965 = vmatpush1.msra.mxu0 0.0
    %966 = vmatprep.subr.mxu0 0.0
    %967 = vmatpush1.msra.mxu0 0.0
    %968 = vmatprep.subr.mxu0 0.0
    %969 = vmatpush1.msra.mxu0 0.0
    %970 = vmatprep.subr.mxu0 0.0
    %971 = vmatpush1.msra.mxu0 0.0
    %972 = vmatprep.subr.mxu0 0.0
    %973 = vmatpush1.msra.mxu0 0.0
    %974 = vmatprep.subr.mxu0 0.0
    %975 = vmatpush1.msra.mxu0 0.0
    %976 = vmatprep.subr.mxu0 0.0
    %977 = vmatpush1.msra.mxu0 0.0
    %978 = vmatprep.mubr.f32.mxu0 0.0
    %979 = vmatmul.mubr.f32.gmra.mrb[0].mxu0 %v912
    %v980 = vpop.f32.mrb[0].mxu0
    %v981 = vadd.f32 0.0, %v980
    %v982 = vpop.f32.mrb[0].mxu0
    %983 = vdwg.mxu0
    %v984 = vadd.f32 %v910, %v981
    %v985 = vxor.u32 %v984, 2147483648
    %v986 = vmul.f32 %v985, 1.442695
    %v987 = vpow.pop %v986
    %v988 = vadd.f32 %v987, 1.0
    %v989 = vrcp.pop %v988
    %v990 = vmul.f32 1.0, %v989
    %991 = vrot.lane.b32.xlu0 %v908, 32
    %v992 = vpop.permute.xlu0 %991
    %v994 = vmul.f32 %v990, %v992
    %996 = vrot.lane.b32.xlu0 %v994, 96
    %v997 = vpop.permute.xlu0 %996
    %v998 = vsel %vm35, %v997, 0
    %1000 = vmatprep.subr.mxu0 0.0
    %1001 = vmatpush1.msra.mxu0 %v29
    %1002 = vmatprep.subr.mxu0 0.0
    %1003 = vmatpush1.msra.mxu0 %v30
    %1004 = vmatprep.subr.mxu0 0.0
    %1005 = vmatpush1.msra.mxu0 %v31
    %1006 = vmatprep.subr.mxu0 0.0
    %1007 = vmatpush1.msra.mxu0 %v32
    %1008 = vmatprep.subr.mxu0 0.0
    %1009 = vmatpush1.msra.mxu0 0.0
    %1010 = vmatprep.subr.mxu0 0.0
    %1011 = vmatpush1.msra.mxu0 0.0
    %1012 = vmatprep.subr.mxu0 0.0
    %1013 = vmatpush1.msra.mxu0 0.0
    %1014 = vmatprep.subr.mxu0 0.0
    %1015 = vmatpush1.msra.mxu0 0.0
    %1016 = vmatprep.subr.mxu0 0.0
    %1017 = vmatpush1.msra.mxu0 0.0
    %1018 = vmatprep.subr.mxu0 0.0
    %1019 = vmatpush1.msra.mxu0 0.0
    %1020 = vmatprep.subr.mxu0 0.0
    %1021 = vmatpush1.msra.mxu0 0.0
    %1022 = vmatprep.subr.mxu0 0.0
    %1023 = vmatpush1.msra.mxu0 0.0
    %1024 = vmatprep.subr.mxu0 0.0
    %1025 = vmatpush1.msra.mxu0 0.0
    %1026 = vmatprep.subr.mxu0 0.0
    %1027 = vmatpush1.msra.mxu0 0.0
    %1028 = vmatprep.subr.mxu0 0.0
    %1029 = vmatpush1.msra.mxu0 0.0
    %1030 = vmatprep.subr.mxu0 0.0
    %1031 = vmatpush1.msra.mxu0 0.0
    %1032 = vmatprep.subr.mxu0 0.0
    %1033 = vmatpush1.msra.mxu0 0.0
    %1034 = vmatprep.subr.mxu0 0.0
    %1035 = vmatpush1.msra.mxu0 0.0
    %1036 = vmatprep.subr.mxu0 0.0
    %1037 = vmatpush1.msra.mxu0 0.0
    %1038 = vmatprep.subr.mxu0 0.0
    %1039 = vmatpush1.msra.mxu0 0.0
    %1040 = vmatprep.subr.mxu0 0.0
    %1041 = vmatpush1.msra.mxu0 0.0
    %1042 = vmatprep.subr.mxu0 0.0
    %1043 = vmatpush1.msra.mxu0 0.0
    %1044 = vmatprep.subr.mxu0 0.0
    %1045 = vmatpush1.msra.mxu0 0.0
    %1046 = vmatprep.subr.mxu0 0.0
    %1047 = vmatpush1.msra.mxu0 0.0
    %1048 = vmatprep.subr.mxu0 0.0
    %1049 = vmatpush1.msra.mxu0 0.0
    %1050 = vmatprep.subr.mxu0 0.0
    %1051 = vmatpush1.msra.mxu0 0.0
    %1052 = vmatprep.subr.mxu0 0.0
    %1053 = vmatpush1.msra.mxu0 0.0
    %1054 = vmatprep.subr.mxu0 0.0
    %1055 = vmatpush1.msra.mxu0 0.0
    %1056 = vmatprep.subr.mxu0 0.0
    %1057 = vmatpush1.msra.mxu0 0.0
    %1058 = vmatprep.subr.mxu0 0.0
    %1059 = vmatpush1.msra.mxu0 0.0
    %1060 = vmatprep.subr.mxu0 0.0
    %1061 = vmatpush1.msra.mxu0 0.0
    %1062 = vmatprep.subr.mxu0 0.0
    %1063 = vmatpush1.msra.mxu0 0.0
    %1064 = vmatprep.mubr.f32.mxu0 0.0
    %1065 = vmatmul.mubr.f32.gmra.mrb[0].mxu0 %v998
    %v1066 = vpop.f32.mrb[0].mxu0
    %v1067 = vadd.f32 0.0, %v1066
    %v1068 = vpop.f32.mrb[0].mxu0
    %1069 = vdwg.mxu0
    %1071 = vrot.lane.b32.xlu0 %v1067, 64
    %v1072 = vpop.permute.xlu0 %1071
    %v1074 = vadd.f32 %v910, %v1072
    %v1075 = vtanh.pop %v1074
    %v1076 = vmul.f32 %v990, %v908
    %v1077 = vsub.f32 1.0, %v990
    %1079 = vrot.lane.b32.xlu0 %v1075, 64
    %v1080 = vpop.permute.xlu0 %1079
    %v1082 = vmul.f32 %v1077, %v1080
    %v1083 = vadd.f32 %v1076, %v1082
    %s1084 = scalar_lea.vmem %s0, 48
    %v1085 = vld [vmem:[%s1084] sm:$0xff]
    %v1087 = vsel %vm35, %v1083, 0
    %1089 = vmatprep.subr.mxu0 0.0
    %1090 = vmatpush1.msra.mxu0 %v25
    %1091 = vmatprep.subr.mxu0 0.0
    %1092 = vmatpush1.msra.mxu0 %v26
    %1093 = vmatprep.subr.mxu0 0.0
    %1094 = vmatpush1.msra.mxu0 %v27
    %1095 = vmatprep.subr.mxu0 0.0
    %1096 = vmatpush1.msra.mxu0 %v28
    %1097 = vmatprep.subr.mxu0 0.0
    %1098 = vmatpush1.msra.mxu0 0.0
    %1099 = vmatprep.subr.mxu0 0.0
    %1100 = vmatpush1.msra.mxu0 0.0
    %1101 = vmatprep.subr.mxu0 0.0
    %1102 = vmatpush1.msra.mxu0 0.0
    %1103 = vmatprep.subr.mxu0 0.0
    %1104 = vmatpush1.msra.mxu0 0.0
    %1105 = vmatprep.subr.mxu0 0.0
    %1106 = vmatpush1.msra.mxu0 0.0
    %1107 = vmatprep.subr.mxu0 0.0
    %1108 = vmatpush1.msra.mxu0 0.0
    %1109 = vmatprep.subr.mxu0 0.0
    %1110 = vmatpush1.msra.mxu0 0.0
    %1111 = vmatprep.subr.mxu0 0.0
    %1112 = vmatpush1.msra.mxu0 0.0
    %1113 = vmatprep.subr.mxu0 0.0
    %1114 = vmatpush1.msra.mxu0 0.0
    %1115 = vmatprep.subr.mxu0 0.0
    %1116 = vmatpush1.msra.mxu0 0.0
    %1117 = vmatprep.subr.mxu0 0.0
    %1118 = vmatpush1.msra.mxu0 0.0
    %1119 = vmatprep.subr.mxu0 0.0
    %1120 = vmatpush1.msra.mxu0 0.0
    %1121 = vmatprep.subr.mxu0 0.0
    %1122 = vmatpush1.msra.mxu0 0.0
    %1123 = vmatprep.subr.mxu0 0.0
    %1124 = vmatpush1.msra.mxu0 0.0
    %1125 = vmatprep.subr.mxu0 0.0
    %1126 = vmatpush1.msra.mxu0 0.0
    %1127 = vmatprep.subr.mxu0 0.0
    %1128 = vmatpush1.msra.mxu0 0.0
    %1129 = vmatprep.subr.mxu0 0.0
    %1130 = vmatpush1.msra.mxu0 0.0
    %1131 = vmatprep.subr.mxu0 0.0
    %1132 = vmatpush1.msra.mxu0 0.0
    %1133 = vmatprep.subr.mxu0 0.0
    %1134 = vmatpush1.msra.mxu0 0.0
    %1135 = vmatprep.subr.mxu0 0.0
    %1136 = vmatpush1.msra.mxu0 0.0
    %1137 = vmatprep.subr.mxu0 0.0
    %1138 = vmatpush1.msra.mxu0 0.0
    %1139 = vmatprep.subr.mxu0 0.0
    %1140 = vmatpush1.msra.mxu0 0.0
    %1141 = vmatprep.subr.mxu0 0.0
    %1142 = vmatpush1.msra.mxu0 0.0
    %1143 = vmatprep.subr.mxu0 0.0
    %1144 = vmatpush1.msra.mxu0 0.0
    %1145 = vmatprep.subr.mxu0 0.0
    %1146 = vmatpush1.msra.mxu0 0.0
    %1147 = vmatprep.subr.mxu0 0.0
    %1148 = vmatpush1.msra.mxu0 0.0
    %1149 = vmatprep.subr.mxu0 0.0
    %1150 = vmatpush1.msra.mxu0 0.0
    %1151 = vmatprep.subr.mxu0 0.0
    %1152 = vmatpush1.msra.mxu0 0.0
    %1153 = vmatprep.mubr.f32.mxu0 0.0
    %1154 = vmatmul.mubr.f32.gmra.mrb[0].mxu0 %v1087
    %v1155 = vpop.f32.mrb[0].mxu0
    %v1156 = vadd.f32 0.0, %v1155
    %v1157 = vpop.f32.mrb[0].mxu0
    %1158 = vdwg.mxu0
    %v1159 = vadd.f32 %v1085, %v1156
    %v1160 = vxor.u32 %v1159, 2147483648
    %v1161 = vmul.f32 %v1160, 1.442695
    %v1162 = vpow.pop %v1161
    %v1163 = vadd.f32 %v1162, 1.0
    %v1164 = vrcp.pop %v1163
    %v1165 = vmul.f32 1.0, %v1164
    %1166 = vrot.lane.b32.xlu0 %v1083, 32
    %v1167 = vpop.permute.xlu0 %1166
    %v1169 = vmul.f32 %v1165, %v1167
    %1171 = vrot.lane.b32.xlu0 %v1169, 96
    %v1172 = vpop.permute.xlu0 %1171
    %v1173 = vsel %vm35, %v1172, 0
    %1175 = vmatprep.subr.mxu0 0.0
    %1176 = vmatpush1.msra.mxu0 %v29
    %1177 = vmatprep.subr.mxu0 0.0
    %1178 = vmatpush1.msra.mxu0 %v30
    %1179 = vmatprep.subr.mxu0 0.0
    %1180 = vmatpush1.msra.mxu0 %v31
    %1181 = vmatprep.subr.mxu0 0.0
    %1182 = vmatpush1.msra.mxu0 %v32
    %1183 = vmatprep.subr.mxu0 0.0
    %1184 = vmatpush1.msra.mxu0 0.0
    %1185 = vmatprep.subr.mxu0 0.0
    %1186 = vmatpush1.msra.mxu0 0.0
    %1187 = vmatprep.subr.mxu0 0.0
    %1188 = vmatpush1.msra.mxu0 0.0
    %1189 = vmatprep.subr.mxu0 0.0
    %1190 = vmatpush1.msra.mxu0 0.0
    %1191 = vmatprep.subr.mxu0 0.0
    %1192 = vmatpush1.msra.mxu0 0.0
    %1193 = vmatprep.subr.mxu0 0.0
    %1194 = vmatpush1.msra.mxu0 0.0
    %1195 = vmatprep.subr.mxu0 0.0
    %1196 = vmatpush1.msra.mxu0 0.0
    %1197 = vmatprep.subr.mxu0 0.0
    %1198 = vmatpush1.msra.mxu0 0.0
    %1199 = vmatprep.subr.mxu0 0.0
    %1200 = vmatpush1.msra.mxu0 0.0
    %1201 = vmatprep.subr.mxu0 0.0
    %1202 = vmatpush1.msra.mxu0 0.0
    %1203 = vmatprep.subr.mxu0 0.0
    %1204 = vmatpush1.msra.mxu0 0.0
    %1205 = vmatprep.subr.mxu0 0.0
    %1206 = vmatpush1.msra.mxu0 0.0
    %1207 = vmatprep.subr.mxu0 0.0
    %1208 = vmatpush1.msra.mxu0 0.0
    %1209 = vmatprep.subr.mxu0 0.0
    %1210 = vmatpush1.msra.mxu0 0.0
    %1211 = vmatprep.subr.mxu0 0.0
    %1212 = vmatpush1.msra.mxu0 0.0
    %1213 = vmatprep.subr.mxu0 0.0
    %1214 = vmatpush1.msra.mxu0 0.0
    %1215 = vmatprep.subr.mxu0 0.0
    %1216 = vmatpush1.msra.mxu0 0.0
    %1217 = vmatprep.subr.mxu0 0.0
    %1218 = vmatpush1.msra.mxu0 0.0
    %1219 = vmatprep.subr.mxu0 0.0
    %1220 = vmatpush1.msra.mxu0 0.0
    %1221 = vmatprep.subr.mxu0 0.0
    %1222 = vmatpush1.msra.mxu0 0.0
    %1223 = vmatprep.subr.mxu0 0.0
    %1224 = vmatpush1.msra.mxu0 0.0
    %1225 = vmatprep.subr.mxu0 0.0
    %1226 = vmatpush1.msra.mxu0 0.0
    %1227 = vmatprep.subr.mxu0 0.0
    %1228 = vmatpush1.msra.mxu0 0.0
    %1229 = vmatprep.subr.mxu0 0.0
    %1230 = vmatpush1.msra.mxu0 0.0
    %1231 = vmatprep.subr.mxu0 0.0
    %1232 = vmatpush1.msra.mxu0 0.0
    %1233 = vmatprep.subr.mxu0 0.0
    %1234 = vmatpush1.msra.mxu0 0.0
    %1235 = vmatprep.subr.mxu0 0.0
    %1236 = vmatpush1.msra.mxu0 0.0
    %1237 = vmatprep.subr.mxu0 0.0
    %1238 = vmatpush1.msra.mxu0 0.0
    %1239 = vmatprep.mubr.f32.mxu0 0.0
    %1240 = vmatmul.mubr.f32.gmra.mrb[0].mxu0 %v1173
    %v1241 = vpop.f32.mrb[0].mxu0
    %v1242 = vadd.f32 0.0, %v1241
    %v1243 = vpop.f32.mrb[0].mxu0
    %1244 = vdwg.mxu0
    %1246 = vrot.lane.b32.xlu0 %v1242, 64
    %v1247 = vpop.permute.xlu0 %1246
    %v1249 = vadd.f32 %v1085, %v1247
    %v1250 = vtanh.pop %v1249
    %v1251 = vmul.f32 %v1165, %v1083
    %v1252 = vsub.f32 1.0, %v1165
    %1254 = vrot.lane.b32.xlu0 %v1250, 64
    %v1255 = vpop.permute.xlu0 %1254
    %v1257 = vmul.f32 %v1252, %v1255
    %v1258 = vadd.f32 %v1251, %v1257
    %s1259 = scalar_lea.vmem %s0, 56
    %v1260 = vld [vmem:[%s1259] sm:$0xff]
    %v1262 = vsel %vm35, %v1258, 0
    %1264 = vmatprep.subr.mxu0 0.0
    %1265 = vmatpush1.msra.mxu0 %v25
    %1266 = vmatprep.subr.mxu0 0.0
    %1267 = vmatpush1.msra.mxu0 %v26
    %1268 = vmatprep.subr.mxu0 0.0
    %1269 = vmatpush1.msra.mxu0 %v27
    %1270 = vmatprep.subr.mxu0 0.0
    %1271 = vmatpush1.msra.mxu0 %v28
    %1272 = vmatprep.subr.mxu0 0.0
    %1273 = vmatpush1.msra.mxu0 0.0
    %1274 = vmatprep.subr.mxu0 0.0
    %1275 = vmatpush1.msra.mxu0 0.0
    %1276 = vmatprep.subr.mxu0 0.0
    %1277 = vmatpush1.msra.mxu0 0.0
    %1278 = vmatprep.subr.mxu0 0.0
    %1279 = vmatpush1.msra.mxu0 0.0
    %1280 = vmatprep.subr.mxu0 0.0
    %1281 = vmatpush1.msra.mxu0 0.0
    %1282 = vmatprep.subr.mxu0 0.0
    %1283 = vmatpush1.msra.mxu0 0.0
    %1284 = vmatprep.subr.mxu0 0.0
    %1285 = vmatpush1.msra.mxu0 0.0
    %1286 = vmatprep.subr.mxu0 0.0
    %1287 = vmatpush1.msra.mxu0 0.0
    %1288 = vmatprep.subr.mxu0 0.0
    %1289 = vmatpush1.msra.mxu0 0.0
    %1290 = vmatprep.subr.mxu0 0.0
    %1291 = vmatpush1.msra.mxu0 0.0
    %1292 = vmatprep.subr.mxu0 0.0
    %1293 = vmatpush1.msra.mxu0 0.0
    %1294 = vmatprep.subr.mxu0 0.0
    %1295 = vmatpush1.msra.mxu0 0.0
    %1296 = vmatprep.subr.mxu0 0.0
    %1297 = vmatpush1.msra.mxu0 0.0
    %1298 = vmatprep.subr.mxu0 0.0
    %1299 = vmatpush1.msra.mxu0 0.0
    %1300 = vmatprep.subr.mxu0 0.0
    %1301 = vmatpush1.msra.mxu0 0.0
    %1302 = vmatprep.subr.mxu0 0.0
    %1303 = vmatpush1.msra.mxu0 0.0
    %1304 = vmatprep.subr.mxu0 0.0
    %1305 = vmatpush1.msra.mxu0 0.0
    %1306 = vmatprep.subr.mxu0 0.0
    %1307 = vmatpush1.msra.mxu0 0.0
    %1308 = vmatprep.subr.mxu0 0.0
    %1309 = vmatpush1.msra.mxu0 0.0
    %1310 = vmatprep.subr.mxu0 0.0
    %1311 = vmatpush1.msra.mxu0 0.0
    %1312 = vmatprep.subr.mxu0 0.0
    %1313 = vmatpush1.msra.mxu0 0.0
    %1314 = vmatprep.subr.mxu0 0.0
    %1315 = vmatpush1.msra.mxu0 0.0
    %1316 = vmatprep.subr.mxu0 0.0
    %1317 = vmatpush1.msra.mxu0 0.0
    %1318 = vmatprep.subr.mxu0 0.0
    %1319 = vmatpush1.msra.mxu0 0.0
    %1320 = vmatprep.subr.mxu0 0.0
    %1321 = vmatpush1.msra.mxu0 0.0
    %1322 = vmatprep.subr.mxu0 0.0
    %1323 = vmatpush1.msra.mxu0 0.0
    %1324 = vmatprep.subr.mxu0 0.0
    %1325 = vmatpush1.msra.mxu0 0.0
    %1326 = vmatprep.subr.mxu0 0.0
    %1327 = vmatpush1.msra.mxu0 0.0
    %1328 = vmatprep.mubr.f32.mxu0 0.0
    %1329 = vmatmul.mubr.f32.gmra.mrb[0].mxu0 %v1262
    %v1330 = vpop.f32.mrb[0].mxu0
    %v1331 = vadd.f32 0.0, %v1330
    %v1332 = vpop.f32.mrb[0].mxu0
    %1333 = vdwg.mxu0
    %v1334 = vadd.f32 %v1260, %v1331
    %v1335 = vxor.u32 %v1334, 2147483648
    %v1336 = vmul.f32 %v1335, 1.442695
    %v1337 = vpow.pop %v1336
    %v1338 = vadd.f32 %v1337, 1.0
    %v1339 = vrcp.pop %v1338
    %v1340 = vmul.f32 1.0, %v1339
    %1341 = vrot.lane.b32.xlu0 %v1258, 32
    %v1342 = vpop.permute.xlu0 %1341
    %v1344 = vmul.f32 %v1340, %v1342
    %1346 = vrot.lane.b32.xlu0 %v1344, 96
    %v1347 = vpop.permute.xlu0 %1346
    %v1348 = vsel %vm35, %v1347, 0
    %1350 = vmatprep.subr.mxu0 0.0
    %1351 = vmatpush1.msra.mxu0 %v29
    %1352 = vmatprep.subr.mxu0 0.0
    %1353 = vmatpush1.msra.mxu0 %v30
    %1354 = vmatprep.subr.mxu0 0.0
    %1355 = vmatpush1.msra.mxu0 %v31
    %1356 = vmatprep.subr.mxu0 0.0
    %1357 = vmatpush1.msra.mxu0 %v32
    %1358 = vmatprep.subr.mxu0 0.0
    %1359 = vmatpush1.msra.mxu0 0.0
    %1360 = vmatprep.subr.mxu0 0.0
    %1361 = vmatpush1.msra.mxu0 0.0
    %1362 = vmatprep.subr.mxu0 0.0
    %1363 = vmatpush1.msra.mxu0 0.0
    %1364 = vmatprep.subr.mxu0 0.0
    %1365 = vmatpush1.msra.mxu0 0.0
    %1366 = vmatprep.subr.mxu0 0.0
    %1367 = vmatpush1.msra.mxu0 0.0
    %1368 = vmatprep.subr.mxu0 0.0
    %1369 = vmatpush1.msra.mxu0 0.0
    %1370 = vmatprep.subr.mxu0 0.0
    %1371 = vmatpush1.msra.mxu0 0.0
    %1372 = vmatprep.subr.mxu0 0.0
    %1373 = vmatpush1.msra.mxu0 0.0
    %1374 = vmatprep.subr.mxu0 0.0
    %1375 = vmatpush1.msra.mxu0 0.0
    %1376 = vmatprep.subr.mxu0 0.0
    %1377 = vmatpush1.msra.mxu0 0.0
    %1378 = vmatprep.subr.mxu0 0.0
    %1379 = vmatpush1.msra.mxu0 0.0
    %1380 = vmatprep.subr.mxu0 0.0
    %1381 = vmatpush1.msra.mxu0 0.0
    %1382 = vmatprep.subr.mxu0 0.0
    %1383 = vmatpush1.msra.mxu0 0.0
    %1384 = vmatprep.subr.mxu0 0.0
    %1385 = vmatpush1.msra.mxu0 0.0
    %1386 = vmatprep.subr.mxu0 0.0
    %1387 = vmatpush1.msra.mxu0 0.0
    %1388 = vmatprep.subr.mxu0 0.0
    %1389 = vmatpush1.msra.mxu0 0.0
    %1390 = vmatprep.subr.mxu0 0.0
    %1391 = vmatpush1.msra.mxu0 0.0
    %1392 = vmatprep.subr.mxu0 0.0
    %1393 = vmatpush1.msra.mxu0 0.0
    %1394 = vmatprep.subr.mxu0 0.0
    %1395 = vmatpush1.msra.mxu0 0.0
    %1396 = vmatprep.subr.mxu0 0.0
    %1397 = vmatpush1.msra.mxu0 0.0
    %1398 = vmatprep.subr.mxu0 0.0
    %1399 = vmatpush1.msra.mxu0 0.0
    %1400 = vmatprep.subr.mxu0 0.0
    %1401 = vmatpush1.msra.mxu0 0.0
    %1402 = vmatprep.subr.mxu0 0.0
    %1403 = vmatpush1.msra.mxu0 0.0
    %1404 = vmatprep.subr.mxu0 0.0
    %1405 = vmatpush1.msra.mxu0 0.0
    %1406 = vmatprep.subr.mxu0 0.0
    %1407 = vmatpush1.msra.mxu0 0.0
    %1408 = vmatprep.subr.mxu0 0.0
    %1409 = vmatpush1.msra.mxu0 0.0
    %1410 = vmatprep.subr.mxu0 0.0
    %1411 = vmatpush1.msra.mxu0 0.0
    %1412 = vmatprep.subr.mxu0 0.0
    %1413 = vmatpush1.msra.mxu0 0.0
    %1414 = vmatprep.mubr.f32.mxu0 0.0
    %1415 = vmatmul.mubr.f32.gmra.mrb[0].mxu0 %v1348
    %v1416 = vpop.f32.mrb[0].mxu0
    %v1417 = vadd.f32 0.0, %v1416
    %v1418 = vpop.f32.mrb[0].mxu0
    %1419 = vdwg.mxu0
    %1421 = vrot.lane.b32.xlu0 %v1417, 64
    %v1422 = vpop.permute.xlu0 %1421
    %v1424 = vadd.f32 %v1260, %v1422
    %v1425 = vtanh.pop %v1424
    %v1426 = vmul.f32 %v1340, %v1258
    %v1427 = vsub.f32 1.0, %v1340
    %1429 = vrot.lane.b32.xlu0 %v1425, 64
    %v1430 = vpop.permute.xlu0 %1429
    %v1432 = vmul.f32 %v1427, %v1430
    %v1433 = vadd.f32 %v1426, %v1432
    %1434 = vst.msk [vmem:[#allocation2] sm:$0xff] %vm35, %v1433
    // Predicated region
    $region22: #{my_gru_pallas.3} parent=1 // pred_check
      %p1435 = pneg %p18
    $region23: #{my_gru_pallas.3} parent=1 // pred_check_branch
      %1437 = sbr.rel (%p1435) target = $region25
    $region24: #{my_gru_pallas.3} parent=1 // pred_region
      %1438 = vst.msk [vmem:[#allocation3] sm:$0xff] %vm35, %v1433
    $region25: #{my_gru_pallas.3} parent=1 // pred_fallthru
      _
    // Predicated region
    $region26: #{my_gru_pallas.3} parent=1 // pred_check
      _
    $region27: #{my_gru_pallas.3} parent=1 // pred_check_branch
      %1440 = sbr.rel (0) target = $region29
    $region28: #{my_gru_pallas.3} parent=1 // pred_region
      %s1442 = ssub.s32 128, 128
      %1443 = vsyncadd [#allocation4], %s1442
      %s1445 = sshll.u32 [#allocation3], 4
      %s1446 = int_to_ptr.vmem [resolvable:$true] %s1445
      %1448 = dma.vmem_to_hbm [thread:$0]  %s1446, 128, %s4, [#allocation4]
    $region29: #{my_gru_pallas.3} parent=1 // pred_fallthru
      _
    // Predicated region
    $region30: #{my_gru_pallas.3} parent=1 // pred_check
      _
    $region31: #{my_gru_pallas.3} parent=1 // pred_check_branch
      %1450 = sbr.rel (0) target = $region33
    $region32: #{my_gru_pallas.3} parent=1 // pred_region
      %1451 = dma.done [#allocation4], 128
    $region33: #{my_gru_pallas.3} parent=1 // pred_fallthru
      _
    %1452 = vsyncpa [#allocation4], 1

</llo_original>
